<compile_context>
chip_gen: v7x
topology: tpu7x:2x2x1
jax: 0.10.0
libtpu: 0.0.40
codegen_flags: <defaults>
</compile_context>

<pallas_src>
import jax
import jax.numpy as jnp
from jax.experimental import pallas as pl
from jax.experimental.pallas import tpu as pltpu

# ---- problem sizes (small, consistent with the module) ----
N = 64            # number of nodes
IN_SIZE = 32      # input feature dim
HIDDEN = 32       # hidden_size (HGSAGELayer output dim)
OUT_SIZE = 8      # final prediction dim
ATTN_HIDDEN = 128 # SemanticAttention hidden size (module default)
M = 2             # number of metapaths


def _elu(x):
    # Clamped-exp ELU: the discarded branch of jnp.where can no longer overflow.
    return jnp.where(x > 0, x, jnp.exp(jnp.minimum(x, 0.0)) - 1.0)


# --------------------------------------------------------------------------
# Single fused kernel: M x (two mean-aggregator SAGEConv layers) + semantic
# attention over metapaths + final predict Linear.  No grid; all operands are
# whole-array VMEM blocks.  The metapath loop (M=2) is statically unrolled.
# --------------------------------------------------------------------------
def hgsage_fused_kernel(a_ref, h_ref, w1_ref, b1_ref, w2_ref, b2_ref,
                        aw1_ref, ab1_ref, aw2t_ref, wp_ref, bp_ref, out_ref):
    h = h_ref[...]                                                    # (N, IN)

    zs = []
    for m in range(M):                                                # static unroll
        a = a_ref[m]                                                  # (N, N)

        # SAGEConv #1:  [h | A h] @ [Wself1; Wneigh1] + b1, then elu
        agg1 = jnp.dot(a, h, preferred_element_type=jnp.float32)      # (N, IN)
        x1 = jnp.concatenate([h, agg1], axis=-1)                      # (N, 2*IN)
        h1 = _elu(jnp.dot(x1, w1_ref[m], preferred_element_type=jnp.float32)
                  + b1_ref[m])                                        # (N, HIDDEN)

        # SAGEConv #2:  [h1 | A h1] @ [Wself2; Wneigh2] + b2, then elu
        agg2 = jnp.dot(a, h1, preferred_element_type=jnp.float32)     # (N, HIDDEN)
        x2 = jnp.concatenate([h1, agg2], axis=-1)                     # (N, 2*HIDDEN)
        h2 = _elu(jnp.dot(x2, w2_ref[m], preferred_element_type=jnp.float32)
                  + b2_ref[m])                                        # (N, HIDDEN)
        zs.append(h2)

    # ---- semantic attention: single MXU pass over all M*N rows ----
    zflat = jnp.concatenate(zs, axis=0)                               # (M*N, HIDDEN)
    proj = jnp.tanh(
        jnp.dot(zflat, aw1_ref[...], preferred_element_type=jnp.float32)
        + ab1_ref[...])                                               # (M*N, ATTN)
    aw2t = aw2t_ref[...]                                              # (1, ATTN)

    # per-metapath score: mean_n( tanh(.) @ w2 ) == (mean_n tanh(.)) . w2
    inv_n = 1.0 / N
    scores = []
    for m in range(M):
        pm = jnp.sum(proj[m * N:(m + 1) * N, :], axis=0,
                     keepdims=True) * inv_n                           # (1, ATTN)
        scores.append(jnp.sum(pm * aw2t, axis=1, keepdims=True))      # (1, 1)

    # softmax over M metapath scores, kept as (1,1) tiles
    wmax = scores[0]
    for m in range(1, M):
        wmax = jnp.maximum(wmax, scores[m])
    exps = [jnp.exp(s - wmax) for s in scores]
    denom = exps[0]
    for m in range(1, M):
        denom = denom + exps[m]

    fused = jnp.zeros((N, HIDDEN), jnp.float32)
    for m in range(M):
        fused = fused + (exps[m] / denom) * zs[m]                     # (N, HIDDEN)

    # ---- final predict Linear ----
    out_ref[...] = (jnp.dot(fused, wp_ref[...],
                            preferred_element_type=jnp.float32)
                    + bp_ref[...])                                    # (N, OUT_SIZE)


# --------------------------------------------------------------------------
# Wrapper
# --------------------------------------------------------------------------
@jax.jit
def hgsage_forward(a, h, params):
    # Stack self/neigh weights along the contraction dim once (tiny XLA concat)
    # so each SAGE layer is a single K = 2*in_dim matmul inside the kernel.
    w1c = jnp.concatenate([params["ws1"], params["wn1"]], axis=1)   # (M, 2*IN, HIDDEN)
    w2c = jnp.concatenate([params["ws2"], params["wn2"]], axis=1)   # (M, 2*HIDDEN, HIDDEN)
    aw2t = params["aw2"].T                                          # (1, ATTN_HIDDEN)

    vmem = pl.BlockSpec(memory_space=pltpu.MemorySpace.VMEM)
    return pl.pallas_call(
        hgsage_fused_kernel,
        out_shape=jax.ShapeDtypeStruct((N, OUT_SIZE), jnp.float32),
        in_specs=[vmem] * 11,
        out_specs=vmem,
    )(a, h,
      w1c, params["b1"], w2c, params["b2"],
      params["aw1"], params["ab1"], aw2t,
      params["wp"], params["bp"])


# --------------------------------------------------------------------------
# Pure-JAX reference (mirrors the PyTorch forward) for a correctness check.
# --------------------------------------------------------------------------
def reference(a, h, params):
    zs = []
    for m in range(M):
        am = a[m]
        agg = am @ h
        h1 = _elu(h @ params["ws1"][m] + agg @ params["wn1"][m] + params["b1"][m])
        agg2 = am @ h1
        h2 = _elu(h1 @ params["ws2"][m] + agg2 @ params["wn2"][m] + params["b2"][m])
        zs.append(h2)
    z = jnp.stack(zs, axis=1)                                   # (N, M, H)
    w = jnp.mean(jnp.tanh(z @ params["aw1"] + params["ab1"]) @ params["aw2"],
                 axis=0)                                        # (M, 1)
    beta = jax.nn.softmax(w, axis=0)                            # (M, 1)
    fused = jnp.sum(beta[None, :, :] * z, axis=1)               # (N, H)
    return fused @ params["wp"] + params["bp"]


def make_params(key):
    ks = jax.random.split(key, 12)
    s = 0.1
    return {
        # per-metapath SAGEConv weights (stored as (in, out), i.e. W.T of torch Linear)
        "ws1": s * jax.random.normal(ks[0], (M, IN_SIZE, HIDDEN), jnp.float32),
        "wn1": s * jax.random.normal(ks[1], (M, IN_SIZE, HIDDEN), jnp.float32),
        "b1":  s * jax.random.normal(ks[2], (M, 1, HIDDEN), jnp.float32),
        "ws2": s * jax.random.normal(ks[3], (M, HIDDEN, HIDDEN), jnp.float32),
        "wn2": s * jax.random.normal(ks[4], (M, HIDDEN, HIDDEN), jnp.float32),
        "b2":  s * jax.random.normal(ks[5], (M, 1, HIDDEN), jnp.float32),
        # semantic attention
        "aw1": s * jax.random.normal(ks[6], (HIDDEN, ATTN_HIDDEN), jnp.float32),
        "ab1": s * jax.random.normal(ks[7], (1, ATTN_HIDDEN), jnp.float32),
        "aw2": s * jax.random.normal(ks[8], (ATTN_HIDDEN, 1), jnp.float32),
        # final predict linear
        "wp":  s * jax.random.normal(ks[9], (HIDDEN, OUT_SIZE), jnp.float32),
        "bp":  s * jax.random.normal(ks[10], (1, OUT_SIZE), jnp.float32),
    }


if __name__ == "__main__":
    key = jax.random.PRNGKey(0)
    k_adj, k_feat, k_par = jax.random.split(key, 3)

    # dense random metapath graphs, row-normalized (mean aggregation)
    adj = (jax.random.uniform(k_adj, (M, N, N)) < 0.15).astype(jnp.float32)
    deg = jnp.maximum(adj.sum(axis=-1, keepdims=True), 1.0)
    a = adj / deg                                                # (M, N, N)

    h = jax.random.normal(k_feat, (N, IN_SIZE), jnp.float32)     # node features
    params = make_params(k_par)

    out = hgsage_forward(a, h, params)
    out = jax.block_until_ready(out)

    ref = reference(a, h, params)
    assert out.shape == (N, OUT_SIZE)
    assert jnp.allclose(out, ref, rtol=1e-4, atol=1e-4), "mismatch vs reference"

    print("KERNEL_OK")
</pallas_src>

<mosaic_0001>
module attributes {stable_mosaic.version = 11 : i64} {
  func.func @hgsage_fused_kernel(%arg0: memref<2x64x64xf32, #tpu.memory_space<vmem>>, %arg1: memref<64x32xf32, #tpu.memory_space<vmem>>, %arg2: memref<2x64x32xf32, #tpu.memory_space<vmem>>, %arg3: memref<2x1x32xf32, #tpu.memory_space<vmem>>, %arg4: memref<2x64x32xf32, #tpu.memory_space<vmem>>, %arg5: memref<2x1x32xf32, #tpu.memory_space<vmem>>, %arg6: memref<32x128xf32, #tpu.memory_space<vmem>>, %arg7: memref<1x128xf32, #tpu.memory_space<vmem>>, %arg8: memref<1x128xf32, #tpu.memory_space<vmem>>, %arg9: memref<32x8xf32, #tpu.memory_space<vmem>>, %arg10: memref<1x8xf32, #tpu.memory_space<vmem>>, %arg11: memref<64x8xf32, #tpu.memory_space<vmem>>) attributes {dimension_semantics = [], scalar_prefetch = 0 : i64, scratch_operands = 0 : i64, tpu.core_type = #tpu.core_type<tc>} {
    %c0 = arith.constant 0 : index
    %c0_0 = arith.constant 0 : index
    %0 = vector.load %arg1[%c0, %c0_0] : memref<64x32xf32, #tpu.memory_space<vmem>>, vector<64x32xf32>
    %c0_1 = arith.constant 0 : index
    %c0_2 = arith.constant 0 : index
    %c0_3 = arith.constant 0 : index
    %1 = vector.load %arg0[%c0_1, %c0_2, %c0_3] : memref<2x64x64xf32, #tpu.memory_space<vmem>>, vector<1x64x64xf32>
    %2 = vector.shape_cast %1 : vector<1x64x64xf32> to vector<64x64xf32>
    %cst = arith.constant dense<0.000000e+00> : vector<64x32xf32>
    %3 = tpu.matmul %2, %0, %cst {dimension_numbers = #tpu.dot_dimension_numbers<[1], [0], [0], [1], [0, 0, 1, 1], [], []>} : vector<64x64xf32>, vector<64x32xf32>, vector<64x32xf32> -> vector<64x32xf32>
    %4 = tpu.concatenate %0, %3 in 1 : vector<64x32xf32>, vector<64x32xf32> -> vector<64x64xf32>
    %c0_4 = arith.constant 0 : index
    %c0_5 = arith.constant 0 : index
    %c0_6 = arith.constant 0 : index
    %5 = vector.load %arg2[%c0_4, %c0_5, %c0_6] : memref<2x64x32xf32, #tpu.memory_space<vmem>>, vector<1x64x32xf32>
    %6 = vector.shape_cast %5 : vector<1x64x32xf32> to vector<64x32xf32>
    %cst_7 = arith.constant dense<0.000000e+00> : vector<64x32xf32>
    %7 = tpu.matmul %4, %6, %cst_7 {dimension_numbers = #tpu.dot_dimension_numbers<[1], [0], [0], [1], [0, 0, 1, 1], [], []>} : vector<64x64xf32>, vector<64x32xf32>, vector<64x32xf32> -> vector<64x32xf32>
    %c0_8 = arith.constant 0 : index
    %c0_9 = arith.constant 0 : index
    %c0_10 = arith.constant 0 : index
    %8 = vector.load %arg3[%c0_8, %c0_9, %c0_10] : memref<2x1x32xf32, #tpu.memory_space<vmem>>, vector<1x1x32xf32>
    %9 = vector.shape_cast %8 : vector<1x1x32xf32> to vector<1x32xf32>
    %10 = vector.broadcast %9 : vector<1x32xf32> to vector<64x32xf32>
    %11 = arith.addf %7, %10 : vector<64x32xf32>
    %cst_11 = arith.constant 0.000000e+00 : f32
    %12 = vector.broadcast %cst_11 : f32 to vector<64x32xf32>
    %13 = arith.cmpf ogt, %11, %12 : vector<64x32xf32>
    %cst_12 = arith.constant 0.000000e+00 : f32
    %14 = vector.broadcast %cst_12 : f32 to vector<64x32xf32>
    %15 = arith.minimumf %11, %14 : vector<64x32xf32>
    %16 = math.exp %15 : vector<64x32xf32>
    %cst_13 = arith.constant 1.000000e+00 : f32
    %17 = vector.broadcast %cst_13 : f32 to vector<64x32xf32>
    %18 = arith.subf %16, %17 : vector<64x32xf32>
    %19 = arith.select %13, %11, %18 : vector<64x32xi1>, vector<64x32xf32>
    %cst_14 = arith.constant dense<0.000000e+00> : vector<64x32xf32>
    %20 = tpu.matmul %2, %19, %cst_14 {dimension_numbers = #tpu.dot_dimension_numbers<[1], [0], [0], [1], [0, 0, 1, 1], [], []>} : vector<64x64xf32>, vector<64x32xf32>, vector<64x32xf32> -> vector<64x32xf32>
    %21 = tpu.concatenate %19, %20 in 1 : vector<64x32xf32>, vector<64x32xf32> -> vector<64x64xf32>
    %c0_15 = arith.constant 0 : index
    %c0_16 = arith.constant 0 : index
    %c0_17 = arith.constant 0 : index
    %22 = vector.load %arg4[%c0_15, %c0_16, %c0_17] : memref<2x64x32xf32, #tpu.memory_space<vmem>>, vector<1x64x32xf32>
    %23 = vector.shape_cast %22 : vector<1x64x32xf32> to vector<64x32xf32>
    %cst_18 = arith.constant dense<0.000000e+00> : vector<64x32xf32>
    %24 = tpu.matmul %21, %23, %cst_18 {dimension_numbers = #tpu.dot_dimension_numbers<[1], [0], [0], [1], [0, 0, 1, 1], [], []>} : vector<64x64xf32>, vector<64x32xf32>, vector<64x32xf32> -> vector<64x32xf32>
    %c0_19 = arith.constant 0 : index
    %c0_20 = arith.constant 0 : index
    %c0_21 = arith.constant 0 : index
    %25 = vector.load %arg5[%c0_19, %c0_20, %c0_21] : memref<2x1x32xf32, #tpu.memory_space<vmem>>, vector<1x1x32xf32>
    %26 = vector.shape_cast %25 : vector<1x1x32xf32> to vector<1x32xf32>
    %27 = vector.broadcast %26 : vector<1x32xf32> to vector<64x32xf32>
    %28 = arith.addf %24, %27 : vector<64x32xf32>
    %cst_22 = arith.constant 0.000000e+00 : f32
    %29 = vector.broadcast %cst_22 : f32 to vector<64x32xf32>
    %30 = arith.cmpf ogt, %28, %29 : vector<64x32xf32>
    %cst_23 = arith.constant 0.000000e+00 : f32
    %31 = vector.broadcast %cst_23 : f32 to vector<64x32xf32>
    %32 = arith.minimumf %28, %31 : vector<64x32xf32>
    %33 = math.exp %32 : vector<64x32xf32>
    %cst_24 = arith.constant 1.000000e+00 : f32
    %34 = vector.broadcast %cst_24 : f32 to vector<64x32xf32>
    %35 = arith.subf %33, %34 : vector<64x32xf32>
    %36 = arith.select %30, %28, %35 : vector<64x32xi1>, vector<64x32xf32>
    %c1 = arith.constant 1 : index
    %c0_25 = arith.constant 0 : index
    %c0_26 = arith.constant 0 : index
    %37 = vector.load %arg0[%c1, %c0_25, %c0_26] : memref<2x64x64xf32, #tpu.memory_space<vmem>>, vector<1x64x64xf32>
    %38 = vector.shape_cast %37 : vector<1x64x64xf32> to vector<64x64xf32>
    %cst_27 = arith.constant dense<0.000000e+00> : vector<64x32xf32>
    %39 = tpu.matmul %38, %0, %cst_27 {dimension_numbers = #tpu.dot_dimension_numbers<[1], [0], [0], [1], [0, 0, 1, 1], [], []>} : vector<64x64xf32>, vector<64x32xf32>, vector<64x32xf32> -> vector<64x32xf32>
    %40 = tpu.concatenate %0, %39 in 1 : vector<64x32xf32>, vector<64x32xf32> -> vector<64x64xf32>
    %c1_28 = arith.constant 1 : index
    %c0_29 = arith.constant 0 : index
    %c0_30 = arith.constant 0 : index
    %41 = vector.load %arg2[%c1_28, %c0_29, %c0_30] : memref<2x64x32xf32, #tpu.memory_space<vmem>>, vector<1x64x32xf32>
    %42 = vector.shape_cast %41 : vector<1x64x32xf32> to vector<64x32xf32>
    %cst_31 = arith.constant dense<0.000000e+00> : vector<64x32xf32>
    %43 = tpu.matmul %40, %42, %cst_31 {dimension_numbers = #tpu.dot_dimension_numbers<[1], [0], [0], [1], [0, 0, 1, 1], [], []>} : vector<64x64xf32>, vector<64x32xf32>, vector<64x32xf32> -> vector<64x32xf32>
    %c1_32 = arith.constant 1 : index
    %c0_33 = arith.constant 0 : index
    %c0_34 = arith.constant 0 : index
    %44 = vector.load %arg3[%c1_32, %c0_33, %c0_34] : memref<2x1x32xf32, #tpu.memory_space<vmem>>, vector<1x1x32xf32>
    %45 = vector.shape_cast %44 : vector<1x1x32xf32> to vector<1x32xf32>
    %46 = vector.broadcast %45 : vector<1x32xf32> to vector<64x32xf32>
    %47 = arith.addf %43, %46 : vector<64x32xf32>
    %cst_35 = arith.constant 0.000000e+00 : f32
    %48 = vector.broadcast %cst_35 : f32 to vector<64x32xf32>
    %49 = arith.cmpf ogt, %47, %48 : vector<64x32xf32>
    %cst_36 = arith.constant 0.000000e+00 : f32
    %50 = vector.broadcast %cst_36 : f32 to vector<64x32xf32>
    %51 = arith.minimumf %47, %50 : vector<64x32xf32>
    %52 = math.exp %51 : vector<64x32xf32>
    %cst_37 = arith.constant 1.000000e+00 : f32
    %53 = vector.broadcast %cst_37 : f32 to vector<64x32xf32>
    %54 = arith.subf %52, %53 : vector<64x32xf32>
    %55 = arith.select %49, %47, %54 : vector<64x32xi1>, vector<64x32xf32>
    %cst_38 = arith.constant dense<0.000000e+00> : vector<64x32xf32>
    %56 = tpu.matmul %38, %55, %cst_38 {dimension_numbers = #tpu.dot_dimension_numbers<[1], [0], [0], [1], [0, 0, 1, 1], [], []>} : vector<64x64xf32>, vector<64x32xf32>, vector<64x32xf32> -> vector<64x32xf32>
    %57 = tpu.concatenate %55, %56 in 1 : vector<64x32xf32>, vector<64x32xf32> -> vector<64x64xf32>
    %c1_39 = arith.constant 1 : index
    %c0_40 = arith.constant 0 : index
    %c0_41 = arith.constant 0 : index
    %58 = vector.load %arg4[%c1_39, %c0_40, %c0_41] : memref<2x64x32xf32, #tpu.memory_space<vmem>>, vector<1x64x32xf32>
    %59 = vector.shape_cast %58 : vector<1x64x32xf32> to vector<64x32xf32>
    %cst_42 = arith.constant dense<0.000000e+00> : vector<64x32xf32>
    %60 = tpu.matmul %57, %59, %cst_42 {dimension_numbers = #tpu.dot_dimension_numbers<[1], [0], [0], [1], [0, 0, 1, 1], [], []>} : vector<64x64xf32>, vector<64x32xf32>, vector<64x32xf32> -> vector<64x32xf32>
    %c1_43 = arith.constant 1 : index
    %c0_44 = arith.constant 0 : index
    %c0_45 = arith.constant 0 : index
    %61 = vector.load %arg5[%c1_43, %c0_44, %c0_45] : memref<2x1x32xf32, #tpu.memory_space<vmem>>, vector<1x1x32xf32>
    %62 = vector.shape_cast %61 : vector<1x1x32xf32> to vector<1x32xf32>
    %63 = vector.broadcast %62 : vector<1x32xf32> to vector<64x32xf32>
    %64 = arith.addf %60, %63 : vector<64x32xf32>
    %cst_46 = arith.constant 0.000000e+00 : f32
    %65 = vector.broadcast %cst_46 : f32 to vector<64x32xf32>
    %66 = arith.cmpf ogt, %64, %65 : vector<64x32xf32>
    %cst_47 = arith.constant 0.000000e+00 : f32
    %67 = vector.broadcast %cst_47 : f32 to vector<64x32xf32>
    %68 = arith.minimumf %64, %67 : vector<64x32xf32>
    %69 = math.exp %68 : vector<64x32xf32>
    %cst_48 = arith.constant 1.000000e+00 : f32
    %70 = vector.broadcast %cst_48 : f32 to vector<64x32xf32>
    %71 = arith.subf %69, %70 : vector<64x32xf32>
    %72 = arith.select %66, %64, %71 : vector<64x32xi1>, vector<64x32xf32>
    %73 = tpu.concatenate %36, %72 in 0 : vector<64x32xf32>, vector<64x32xf32> -> vector<128x32xf32>
    %c0_49 = arith.constant 0 : index
    %c0_50 = arith.constant 0 : index
    %74 = vector.load %arg6[%c0_49, %c0_50] : memref<32x128xf32, #tpu.memory_space<vmem>>, vector<32x128xf32>
    %cst_51 = arith.constant dense<0.000000e+00> : vector<128x128xf32>
    %75 = tpu.matmul %73, %74, %cst_51 {dimension_numbers = #tpu.dot_dimension_numbers<[1], [0], [0], [1], [0, 0, 1, 1], [], []>} : vector<128x32xf32>, vector<32x128xf32>, vector<128x128xf32> -> vector<128x128xf32>
    %c0_52 = arith.constant 0 : index
    %c0_53 = arith.constant 0 : index
    %76 = vector.load %arg7[%c0_52, %c0_53] : memref<1x128xf32, #tpu.memory_space<vmem>>, vector<1x128xf32>
    %77 = vector.broadcast %76 : vector<1x128xf32> to vector<128x128xf32>
    %78 = arith.addf %75, %77 : vector<128x128xf32>
    %79 = math.tanh %78 : vector<128x128xf32>
    %c0_54 = arith.constant 0 : index
    %c0_55 = arith.constant 0 : index
    %80 = vector.load %arg8[%c0_54, %c0_55] : memref<1x128xf32, #tpu.memory_space<vmem>>, vector<1x128xf32>
    %81 = vector.extract_strided_slice %79 {offsets = [0, 0], sizes = [64, 128], strides = [1, 1]} : vector<128x128xf32> to vector<64x128xf32>
    %cst_56 = arith.constant dense<0.000000e+00> : vector<128xf32>
    %82 = vector.multi_reduction <add>, %81, %cst_56 [0] : vector<64x128xf32> to vector<128xf32>
    %83 = vector.shape_cast %82 : vector<128xf32> to vector<1x128xf32>
    %cst_57 = arith.constant 1.562500e-02 : f32
    %84 = vector.broadcast %cst_57 : f32 to vector<1x128xf32>
    %85 = arith.mulf %83, %84 : vector<1x128xf32>
    %86 = arith.mulf %85, %80 : vector<1x128xf32>
    %cst_58 = arith.constant dense<0.000000e+00> : vector<1xf32>
    %87 = vector.multi_reduction <add>, %86, %cst_58 [1] : vector<1x128xf32> to vector<1xf32>
    %88 = vector.shape_cast %87 : vector<1xf32> to vector<1x1xf32>
    %89 = vector.extract_strided_slice %79 {offsets = [64, 0], sizes = [64, 128], strides = [1, 1]} : vector<128x128xf32> to vector<64x128xf32>
    %cst_59 = arith.constant dense<0.000000e+00> : vector<128xf32>
    %90 = vector.multi_reduction <add>, %89, %cst_59 [0] : vector<64x128xf32> to vector<128xf32>
    %91 = vector.shape_cast %90 : vector<128xf32> to vector<1x128xf32>
    %cst_60 = arith.constant 1.562500e-02 : f32
    %92 = vector.broadcast %cst_60 : f32 to vector<1x128xf32>
    %93 = arith.mulf %91, %92 : vector<1x128xf32>
    %94 = arith.mulf %93, %80 : vector<1x128xf32>
    %cst_61 = arith.constant dense<0.000000e+00> : vector<1xf32>
    %95 = vector.multi_reduction <add>, %94, %cst_61 [1] : vector<1x128xf32> to vector<1xf32>
    %96 = vector.shape_cast %95 : vector<1xf32> to vector<1x1xf32>
    %97 = arith.maximumf %88, %96 : vector<1x1xf32>
    %98 = arith.subf %88, %97 : vector<1x1xf32>
    %99 = math.exp %98 : vector<1x1xf32>
    %100 = arith.subf %96, %97 : vector<1x1xf32>
    %101 = math.exp %100 : vector<1x1xf32>
    %102 = arith.addf %99, %101 : vector<1x1xf32>
    %cst_62 = arith.constant 0.000000e+00 : f32
    %103 = vector.broadcast %cst_62 : f32 to vector<64x32xf32>
    %104 = arith.divf %99, %102 : vector<1x1xf32>
    %105 = vector.broadcast %104 : vector<1x1xf32> to vector<64x32xf32>
    %106 = arith.mulf %105, %36 : vector<64x32xf32>
    %107 = arith.addf %103, %106 : vector<64x32xf32>
    %108 = arith.divf %101, %102 : vector<1x1xf32>
    %109 = vector.broadcast %108 : vector<1x1xf32> to vector<64x32xf32>
    %110 = arith.mulf %109, %72 : vector<64x32xf32>
    %111 = arith.addf %107, %110 : vector<64x32xf32>
    %c0_63 = arith.constant 0 : index
    %c0_64 = arith.constant 0 : index
    %112 = vector.load %arg9[%c0_63, %c0_64] : memref<32x8xf32, #tpu.memory_space<vmem>>, vector<32x8xf32>
    %cst_65 = arith.constant dense<0.000000e+00> : vector<64x8xf32>
    %113 = tpu.matmul %111, %112, %cst_65 {dimension_numbers = #tpu.dot_dimension_numbers<[1], [0], [0], [1], [0, 0, 1, 1], [], []>} : vector<64x32xf32>, vector<32x8xf32>, vector<64x8xf32> -> vector<64x8xf32>
    %c0_66 = arith.constant 0 : index
    %c0_67 = arith.constant 0 : index
    %114 = vector.load %arg10[%c0_66, %c0_67] : memref<1x8xf32, #tpu.memory_space<vmem>>, vector<1x8xf32>
    %115 = vector.broadcast %114 : vector<1x8xf32> to vector<64x8xf32>
    %116 = arith.addf %113, %115 : vector<64x8xf32>
    %c0_68 = arith.constant 0 : index
    %c0_69 = arith.constant 0 : index
    %117 = vector.load %arg11[%c0_68, %c0_69] : memref<64x8xf32, #tpu.memory_space<vmem>>, vector<64x8xf32>
    tpu.vector_store %arg11[%c0_68, %c0_69], %116 {strides = array<i32>} : memref<64x8xf32, #tpu.memory_space<vmem>>, vector<64x8xf32>,
    return
  }
}

</mosaic_0001>

<llo_original>
// kernel: hgsage_forward.1
$region0: #{hgsage_forward.1}
  #allocation0 [shape = 'u32[]', space=smem, size = 0x4, offset = 0x4, fixed_abs, tag = 'smem constant byte address 0x4 - core index']
  #allocation1 [shape = 'u32[144,128]{1,0:T(1,128)}', space=vmem, size = 0x12000, scoped, tag = 'internal scratch']
  %s0 = inlined_call_operand.vmem [shape: f32[2,64,64], index: 0, kind: input, shape index: {}]
  %s1 = inlined_call_operand.vmem [shape: f32[64,32], index: 1, kind: input, shape index: {}]
  %s2 = inlined_call_operand.vmem [shape: f32[2,64,32], index: 2, kind: input, shape index: {}]
  %s3 = inlined_call_operand.vmem [shape: f32[2,1,32], index: 3, kind: input, shape index: {}]
  %s4 = inlined_call_operand.vmem [shape: f32[2,64,32], index: 4, kind: input, shape index: {}]
  %s5 = inlined_call_operand.vmem [shape: f32[2,1,32], index: 5, kind: input, shape index: {}]
  %s6 = inlined_call_operand.vmem [shape: f32[32,128], index: 6, kind: input, shape index: {}]
  %s7 = inlined_call_operand.vmem [shape: f32[1,128], index: 7, kind: input, shape index: {}]
  %s8 = inlined_call_operand.vmem [shape: f32[1,128], index: 8, kind: input, shape index: {}]
  %s9 = inlined_call_operand.vmem [shape: f32[32,8], index: 9, kind: input, shape index: {}]
  %s10 = inlined_call_operand.vmem [shape: f32[1,8], index: 10, kind: input, shape index: {}]
  %s11 = inlined_call_operand.vmem [shape: f32[64,8], index: 11, kind: output, shape index: {}]
  %s12 = sld [smem:[#allocation0]]
  $region54: #{hgsage_forward.1} parent=0
    _
  %s14 = ssub.s32 1, %s12
  %s15 = scalar_select 0, %s14, %s12
  // Predicated region
  $region2: #{hgsage_forward.1} parent=0 // pred_check
    _
  $region3: #{hgsage_forward.1} parent=0 // pred_check_branch
    %17 = sbr.rel (0) target = $region5
  $region4: #{hgsage_forward.1} parent=0 // pred_region
    _
  $region5: #{hgsage_forward.1} parent=0 // pred_fallthru
    _
  // Predicated region
  $region6: #{hgsage_forward.1} parent=0 // pred_check
    _
  $region7: #{hgsage_forward.1} parent=0 // pred_check_branch
    %19 = sbr.rel (0) target = $region9
  $region8: #{hgsage_forward.1} parent=0 // pred_region
    _
  $region9: #{hgsage_forward.1} parent=0 // pred_fallthru
    _
  // Predicated region
  $region10: #{hgsage_forward.1} parent=0 // pred_check
    _
  $region11: #{hgsage_forward.1} parent=0 // pred_check_branch
    %21 = sbr.rel (0) target = $region13
  $region12: #{hgsage_forward.1} parent=0 // pred_region
    _
  $region13: #{hgsage_forward.1} parent=0 // pred_fallthru
    _
  // Predicated region
  $region14: #{hgsage_forward.1} parent=0 // pred_check
    _
  $region15: #{hgsage_forward.1} parent=0 // pred_check_branch
    %23 = sbr.rel (0) target = $region17
  $region16: #{hgsage_forward.1} parent=0 // pred_region
    _
  $region17: #{hgsage_forward.1} parent=0 // pred_fallthru
    _
  // Predicated region
  $region18: #{hgsage_forward.1} parent=0 // pred_check
    _
  $region19: #{hgsage_forward.1} parent=0 // pred_check_branch
    %25 = sbr.rel (0) target = $region21
  $region20: #{hgsage_forward.1} parent=0 // pred_region
    _
  $region21: #{hgsage_forward.1} parent=0 // pred_fallthru
    _
  // Predicated region
  $region22: #{hgsage_forward.1} parent=0 // pred_check
    _
  $region23: #{hgsage_forward.1} parent=0 // pred_check_branch
    %27 = sbr.rel (0) target = $region25
  $region24: #{hgsage_forward.1} parent=0 // pred_region
    _
  $region25: #{hgsage_forward.1} parent=0 // pred_fallthru
    _
  // Predicated region
  $region26: #{hgsage_forward.1} parent=0 // pred_check
    _
  $region27: #{hgsage_forward.1} parent=0 // pred_check_branch
    %29 = sbr.rel (0) target = $region29
  $region28: #{hgsage_forward.1} parent=0 // pred_region
    _
  $region29: #{hgsage_forward.1} parent=0 // pred_fallthru
    _
  // Predicated region
  $region30: #{hgsage_forward.1} parent=0 // pred_check
    _
  $region31: #{hgsage_forward.1} parent=0 // pred_check_branch
    %31 = sbr.rel (0) target = $region33
  $region32: #{hgsage_forward.1} parent=0 // pred_region
    _
  $region33: #{hgsage_forward.1} parent=0 // pred_fallthru
    _
  // Predicated region
  $region34: #{hgsage_forward.1} parent=0 // pred_check
    _
  $region35: #{hgsage_forward.1} parent=0 // pred_check_branch
    %33 = sbr.rel (0) target = $region37
  $region36: #{hgsage_forward.1} parent=0 // pred_region
    _
  $region37: #{hgsage_forward.1} parent=0 // pred_fallthru
    _
  // Predicated region
  $region38: #{hgsage_forward.1} parent=0 // pred_check
    _
  $region39: #{hgsage_forward.1} parent=0 // pred_check_branch
    %35 = sbr.rel (0) target = $region41
  $region40: #{hgsage_forward.1} parent=0 // pred_region
    _
  $region41: #{hgsage_forward.1} parent=0 // pred_fallthru
    _
  // Predicated region
  $region42: #{hgsage_forward.1} parent=0 // pred_check
    _
  $region43: #{hgsage_forward.1} parent=0 // pred_check_branch
    %37 = sbr.rel (0) target = $region45
  $region44: #{hgsage_forward.1} parent=0 // pred_region
    _
  $region45: #{hgsage_forward.1} parent=0 // pred_fallthru
    _
  %v38 = vld [vmem:[%s1] sm:$0xff]
  %v39 = vld [vmem:[%s1 + $0x8] sm:$0xff]
  %v40 = vld [vmem:[%s1 + $0x10] sm:$0xff]
  %v41 = vld [vmem:[%s1 + $0x18] sm:$0xff]
  %v42 = vld [vmem:[%s1 + $0x20] sm:$0xff]
  %v43 = vld [vmem:[%s1 + $0x28] sm:$0xff]
  %v44 = vld [vmem:[%s1 + $0x30] sm:$0xff]
  %v45 = vld [vmem:[%s1 + $0x38] sm:$0xff]
  %v46 = vld [vmem:[%s0] sm:$0xff]
  %v47 = vld [vmem:[%s0 + $0x8] sm:$0xff]
  %v48 = vld [vmem:[%s0 + $0x10] sm:$0xff]
  %v49 = vld [vmem:[%s0 + $0x18] sm:$0xff]
  %v50 = vld [vmem:[%s0 + $0x20] sm:$0xff]
  %v51 = vld [vmem:[%s0 + $0x28] sm:$0xff]
  %v52 = vld [vmem:[%s0 + $0x30] sm:$0xff]
  %v53 = vld [vmem:[%s0 + $0x38] sm:$0xff]
  %vm54 = vcmask 523264
  %v56 = vsel %vm54, %v46, 0
  %v59 = vsel %vm54, %v47, 0
  %v62 = vsel %vm54, %v48, 0
  %v65 = vsel %vm54, %v49, 0
  %v68 = vsel %vm54, %v50, 0
  %v71 = vsel %vm54, %v51, 0
  %v74 = vsel %vm54, %v52, 0
  %v77 = vsel %vm54, %v53, 0
  %79 = vmatprep.subr.mxu0 0.0
  %80 = vmatpush1.msra.mxu0 %v38
  %81 = vmatprep.subr.mxu0 0.0
  %82 = vmatpush1.msra.mxu0 %v39
  %83 = vmatprep.subr.mxu0 0.0
  %84 = vmatpush1.msra.mxu0 %v40
  %85 = vmatprep.subr.mxu0 0.0
  %86 = vmatpush1.msra.mxu0 %v41
  %87 = vmatprep.subr.mxu0 0.0
  %88 = vmatpush1.msra.mxu0 %v42
  %89 = vmatprep.subr.mxu0 0.0
  %90 = vmatpush1.msra.mxu0 %v43
  %91 = vmatprep.subr.mxu0 0.0
  %92 = vmatpush1.msra.mxu0 %v44
  %93 = vmatprep.subr.mxu0 0.0
  %94 = vmatpush1.msra.mxu0 %v45
  %95 = vmatprep.subr.mxu0 0.0
  %96 = vmatpush1.msra.mxu0 0.0
  %97 = vmatprep.subr.mxu0 0.0
  %98 = vmatpush1.msra.mxu0 0.0
  %99 = vmatprep.subr.mxu0 0.0
  %100 = vmatpush1.msra.mxu0 0.0
  %101 = vmatprep.subr.mxu0 0.0
  %102 = vmatpush1.msra.mxu0 0.0
  %103 = vmatprep.subr.mxu0 0.0
  %104 = vmatpush1.msra.mxu0 0.0
  %105 = vmatprep.subr.mxu0 0.0
  %106 = vmatpush1.msra.mxu0 0.0
  %107 = vmatprep.subr.mxu0 0.0
  %108 = vmatpush1.msra.mxu0 0.0
  %109 = vmatprep.subr.mxu0 0.0
  %110 = vmatpush1.msra.mxu0 0.0
  %111 = vmatprep.subr.mxu0 0.0
  %112 = vmatpush1.msra.mxu0 0.0
  %113 = vmatprep.subr.mxu0 0.0
  %114 = vmatpush1.msra.mxu0 0.0
  %115 = vmatprep.subr.mxu0 0.0
  %116 = vmatpush1.msra.mxu0 0.0
  %117 = vmatprep.subr.mxu0 0.0
  %118 = vmatpush1.msra.mxu0 0.0
  %119 = vmatprep.subr.mxu0 0.0
  %120 = vmatpush1.msra.mxu0 0.0
  %121 = vmatprep.subr.mxu0 0.0
  %122 = vmatpush1.msra.mxu0 0.0
  %123 = vmatprep.subr.mxu0 0.0
  %124 = vmatpush1.msra.mxu0 0.0
  %125 = vmatprep.subr.mxu0 0.0
  %126 = vmatpush1.msra.mxu0 0.0
  %127 = vmatprep.subr.mxu0 0.0
  %128 = vmatpush1.msra.mxu0 0.0
  %129 = vmatprep.subr.mxu0 0.0
  %130 = vmatpush1.msra.mxu0 0.0
  %131 = vmatprep.subr.mxu0 0.0
  %132 = vmatpush1.msra.mxu0 0.0
  %133 = vmatprep.subr.mxu0 0.0
  %134 = vmatpush1.msra.mxu0 0.0
  %135 = vmatprep.subr.mxu0 0.0
  %136 = vmatpush1.msra.mxu0 0.0
  %137 = vmatprep.subr.mxu0 0.0
  %138 = vmatpush1.msra.mxu0 0.0
  %139 = vmatprep.subr.mxu0 0.0
  %140 = vmatpush1.msra.mxu0 0.0
  %141 = vmatprep.subr.mxu0 0.0
  %142 = vmatpush1.msra.mxu0 0.0
  %143 = vmatprep.mubr.f32.mxu0 0.0
  %144 = vmatmul.mubr.f32.gmra.mrb[0].mxu0 %v56
  %v145 = vpop.f32.mrb[0].mxu0
  %v146 = vadd.f32 0.0, %v145
  %v147 = vpop.f32.mrb[0].mxu0
  %148 = vmatprep.mubr.f32.mxu0 0.0
  %149 = vmatmul.mubr.f32.gmra.mrb[0].mxu0 %v59
  %v150 = vpop.f32.mrb[0].mxu0
  %v151 = vadd.f32 0.0, %v150
  %v152 = vpop.f32.mrb[0].mxu0
  %153 = vmatprep.mubr.f32.mxu0 0.0
  %154 = vmatmul.mubr.f32.gmra.mrb[0].mxu0 %v62
  %v155 = vpop.f32.mrb[0].mxu0
  %v156 = vadd.f32 0.0, %v155
  %v157 = vpop.f32.mrb[0].mxu0
  %158 = vmatprep.mubr.f32.mxu0 0.0
  %159 = vmatmul.mubr.f32.gmra.mrb[0].mxu0 %v65
  %v160 = vpop.f32.mrb[0].mxu0
  %v161 = vadd.f32 0.0, %v160
  %v162 = vpop.f32.mrb[0].mxu0
  %163 = vmatprep.mubr.f32.mxu0 0.0
  %164 = vmatmul.mubr.f32.gmra.mrb[0].mxu0 %v68
  %v165 = vpop.f32.mrb[0].mxu0
  %v166 = vadd.f32 0.0, %v165
  %v167 = vpop.f32.mrb[0].mxu0
  %168 = vmatprep.mubr.f32.mxu0 0.0
  %169 = vmatmul.mubr.f32.gmra.mrb[0].mxu0 %v71
  %v170 = vpop.f32.mrb[0].mxu0
  %v171 = vadd.f32 0.0, %v170
  %v172 = vpop.f32.mrb[0].mxu0
  %173 = vmatprep.mubr.f32.mxu0 0.0
  %174 = vmatmul.mubr.f32.gmra.mrb[0].mxu0 %v74
  %v175 = vpop.f32.mrb[0].mxu0
  %v176 = vadd.f32 0.0, %v175
  %v177 = vpop.f32.mrb[0].mxu0
  %178 = vmatprep.mubr.f32.mxu0 0.0
  %179 = vmatmul.mubr.f32.gmra.mrb[0].mxu0 %v77
  %v180 = vpop.f32.mrb[0].mxu0
  %v181 = vadd.f32 0.0, %v180
  %v182 = vpop.f32.mrb[0].mxu0
  %183 = vdwg.mxu0
  %192 = vrot.lane.b32.xlu0 %v146, 32
  %v193 = vpop.permute.xlu0 %192
  %194 = vrot.lane.b32.xlu0 %v151, 32
  %v195 = vpop.permute.xlu0 %194
  %196 = vrot.lane.b32.xlu0 %v156, 32
  %v197 = vpop.permute.xlu0 %196
  %198 = vrot.lane.b32.xlu0 %v161, 32
  %v199 = vpop.permute.xlu0 %198
  %200 = vrot.lane.b32.xlu0 %v166, 32
  %v201 = vpop.permute.xlu0 %200
  %202 = vrot.lane.b32.xlu0 %v171, 32
  %v203 = vpop.permute.xlu0 %202
  %204 = vrot.lane.b32.xlu0 %v176, 32
  %v205 = vpop.permute.xlu0 %204
  %206 = vrot.lane.b32.xlu0 %v181, 32
  %v207 = vpop.permute.xlu0 %206
  %vm216 = vcmask 261120
  %v217 = vsel %vm216, %v38, %v193
  %v218 = vsel %vm216, %v39, %v195
  %v219 = vsel %vm216, %v40, %v197
  %v220 = vsel %vm216, %v41, %v199
  %v221 = vsel %vm216, %v42, %v201
  %v222 = vsel %vm216, %v43, %v203
  %v223 = vsel %vm216, %v44, %v205
  %v224 = vsel %vm216, %v45, %v207
  %v225 = vld [vmem:[%s2] sm:$0xff]
  %v226 = vld [vmem:[%s2 + $0x8] sm:$0xff]
  %v227 = vld [vmem:[%s2 + $0x10] sm:$0xff]
  %v228 = vld [vmem:[%s2 + $0x18] sm:$0xff]
  %v229 = vld [vmem:[%s2 + $0x20] sm:$0xff]
  %v230 = vld [vmem:[%s2 + $0x28] sm:$0xff]
  %v231 = vld [vmem:[%s2 + $0x30] sm:$0xff]
  %v232 = vld [vmem:[%s2 + $0x38] sm:$0xff]
  %v233 = vld [vmem:[%s3] sm:$0x1]
  %v235 = vlaneseq
  %v236 = vshrl.u32 %v235, 7
  %v237 = vsub.s32 0, %v236
  %v238 = vrot.slane %v233, %v237
  %v241 = vsel %vm54, %v217, 0
  %v244 = vsel %vm54, %v218, 0
  %v247 = vsel %vm54, %v219, 0
  %v250 = vsel %vm54, %v220, 0
  %v253 = vsel %vm54, %v221, 0
  %v256 = vsel %vm54, %v222, 0
  %v259 = vsel %vm54, %v223, 0
  %v262 = vsel %vm54, %v224, 0
  %264 = vmatprep.subr.mxu0 0.0
  %265 = vmatpush1.msra.mxu0 %v225
  %266 = vmatprep.subr.mxu0 0.0
  %267 = vmatpush1.msra.mxu0 %v226
  %268 = vmatprep.subr.mxu0 0.0
  %269 = vmatpush1.msra.mxu0 %v227
  %270 = vmatprep.subr.mxu0 0.0
  %271 = vmatpush1.msra.mxu0 %v228
  %272 = vmatprep.subr.mxu0 0.0
  %273 = vmatpush1.msra.mxu0 %v229
  %274 = vmatprep.subr.mxu0 0.0
  %275 = vmatpush1.msra.mxu0 %v230
  %276 = vmatprep.subr.mxu0 0.0
  %277 = vmatpush1.msra.mxu0 %v231
  %278 = vmatprep.subr.mxu0 0.0
  %279 = vmatpush1.msra.mxu0 %v232
  %280 = vmatprep.subr.mxu0 0.0
  %281 = vmatpush1.msra.mxu0 0.0
  %282 = vmatprep.subr.mxu0 0.0
  %283 = vmatpush1.msra.mxu0 0.0
  %284 = vmatprep.subr.mxu0 0.0
  %285 = vmatpush1.msra.mxu0 0.0
  %286 = vmatprep.subr.mxu0 0.0
  %287 = vmatpush1.msra.mxu0 0.0
  %288 = vmatprep.subr.mxu0 0.0
  %289 = vmatpush1.msra.mxu0 0.0
  %290 = vmatprep.subr.mxu0 0.0
  %291 = vmatpush1.msra.mxu0 0.0
  %292 = vmatprep.subr.mxu0 0.0
  %293 = vmatpush1.msra.mxu0 0.0
  %294 = vmatprep.subr.mxu0 0.0
  %295 = vmatpush1.msra.mxu0 0.0
  %296 = vmatprep.subr.mxu0 0.0
  %297 = vmatpush1.msra.mxu0 0.0
  %298 = vmatprep.subr.mxu0 0.0
  %299 = vmatpush1.msra.mxu0 0.0
  %300 = vmatprep.subr.mxu0 0.0
  %301 = vmatpush1.msra.mxu0 0.0
  %302 = vmatprep.subr.mxu0 0.0
  %303 = vmatpush1.msra.mxu0 0.0
  %304 = vmatprep.subr.mxu0 0.0
  %305 = vmatpush1.msra.mxu0 0.0
  %306 = vmatprep.subr.mxu0 0.0
  %307 = vmatpush1.msra.mxu0 0.0
  %308 = vmatprep.subr.mxu0 0.0
  %309 = vmatpush1.msra.mxu0 0.0
  %310 = vmatprep.subr.mxu0 0.0
  %311 = vmatpush1.msra.mxu0 0.0
  %312 = vmatprep.subr.mxu0 0.0
  %313 = vmatpush1.msra.mxu0 0.0
  %314 = vmatprep.subr.mxu0 0.0
  %315 = vmatpush1.msra.mxu0 0.0
  %316 = vmatprep.subr.mxu0 0.0
  %317 = vmatpush1.msra.mxu0 0.0
  %318 = vmatprep.subr.mxu0 0.0
  %319 = vmatpush1.msra.mxu0 0.0
  %320 = vmatprep.subr.mxu0 0.0
  %321 = vmatpush1.msra.mxu0 0.0
  %322 = vmatprep.subr.mxu0 0.0
  %323 = vmatpush1.msra.mxu0 0.0
  %324 = vmatprep.subr.mxu0 0.0
  %325 = vmatpush1.msra.mxu0 0.0
  %326 = vmatprep.subr.mxu0 0.0
  %327 = vmatpush1.msra.mxu0 0.0
  %328 = vmatprep.mubr.f32.mxu0 0.0
  %329 = vmatmul.mubr.f32.gmra.mrb[0].mxu0 %v241
  %v330 = vpop.f32.mrb[0].mxu0
  %v331 = vadd.f32 %v238, %v330
  %v332 = vpop.f32.mrb[0].mxu0
  %333 = vmatprep.mubr.f32.mxu0 0.0
  %334 = vmatmul.mubr.f32.gmra.mrb[0].mxu0 %v244
  %v335 = vpop.f32.mrb[0].mxu0
  %v336 = vadd.f32 %v238, %v335
  %v337 = vpop.f32.mrb[0].mxu0
  %338 = vmatprep.mubr.f32.mxu0 0.0
  %339 = vmatmul.mubr.f32.gmra.mrb[0].mxu0 %v247
  %v340 = vpop.f32.mrb[0].mxu0
  %v341 = vadd.f32 %v238, %v340
  %v342 = vpop.f32.mrb[0].mxu0
  %343 = vmatprep.mubr.f32.mxu0 0.0
  %344 = vmatmul.mubr.f32.gmra.mrb[0].mxu0 %v250
  %v345 = vpop.f32.mrb[0].mxu0
  %v346 = vadd.f32 %v238, %v345
  %v347 = vpop.f32.mrb[0].mxu0
  %348 = vmatprep.mubr.f32.mxu0 0.0
  %349 = vmatmul.mubr.f32.gmra.mrb[0].mxu0 %v253
  %v350 = vpop.f32.mrb[0].mxu0
  %v351 = vadd.f32 %v238, %v350
  %v352 = vpop.f32.mrb[0].mxu0
  %353 = vmatprep.mubr.f32.mxu0 0.0
  %354 = vmatmul.mubr.f32.gmra.mrb[0].mxu0 %v256
  %v355 = vpop.f32.mrb[0].mxu0
  %v356 = vadd.f32 %v238, %v355
  %v357 = vpop.f32.mrb[0].mxu0
  %358 = vmatprep.mubr.f32.mxu0 0.0
  %359 = vmatmul.mubr.f32.gmra.mrb[0].mxu0 %v259
  %v360 = vpop.f32.mrb[0].mxu0
  %v361 = vadd.f32 %v238, %v360
  %v362 = vpop.f32.mrb[0].mxu0
  %363 = vmatprep.mubr.f32.mxu0 0.0
  %364 = vmatmul.mubr.f32.gmra.mrb[0].mxu0 %v262
  %v365 = vpop.f32.mrb[0].mxu0
  %v366 = vadd.f32 %v238, %v365
  %v367 = vpop.f32.mrb[0].mxu0
  %368 = vdwg.mxu0
  %vm369 = vcmp.gt.f32.partialorder %v331, 0.0
  %vm370 = vcmp.gt.f32.partialorder %v336, 0.0
  %vm371 = vcmp.gt.f32.partialorder %v341, 0.0
  %vm372 = vcmp.gt.f32.partialorder %v346, 0.0
  %vm373 = vcmp.gt.f32.partialorder %v351, 0.0
  %vm374 = vcmp.gt.f32.partialorder %v356, 0.0
  %vm375 = vcmp.gt.f32.partialorder %v361, 0.0
  %vm376 = vcmp.gt.f32.partialorder %v366, 0.0
  %v377 = vmin.f32 %v331, 0.0
  %v378 = vmin.f32 %v336, 0.0
  %v379 = vmin.f32 %v341, 0.0
  %v380 = vmin.f32 %v346, 0.0
  %v381 = vmin.f32 %v351, 0.0
  %v382 = vmin.f32 %v356, 0.0
  %v383 = vmin.f32 %v361, 0.0
  %v384 = vmin.f32 %v366, 0.0
  %v385 = vmul.f32 %v377, 1.442695
  %v386 = vpow.pop %v385
  %v387 = vmul.f32 %v378, 1.442695
  %v388 = vpow.pop %v387
  %v389 = vmul.f32 %v379, 1.442695
  %v390 = vpow.pop %v389
  %v391 = vmul.f32 %v380, 1.442695
  %v392 = vpow.pop %v391
  %v393 = vmul.f32 %v381, 1.442695
  %v394 = vpow.pop %v393
  %v395 = vmul.f32 %v382, 1.442695
  %v396 = vpow.pop %v395
  %v397 = vmul.f32 %v383, 1.442695
  %v398 = vpow.pop %v397
  %v399 = vmul.f32 %v384, 1.442695
  %v400 = vpow.pop %v399
  %v401 = vsub.f32 %v386, 1.0
  %v402 = vsub.f32 %v388, 1.0
  %v403 = vsub.f32 %v390, 1.0
  %v404 = vsub.f32 %v392, 1.0
  %v405 = vsub.f32 %v394, 1.0
  %v406 = vsub.f32 %v396, 1.0
  %v407 = vsub.f32 %v398, 1.0
  %v408 = vsub.f32 %v400, 1.0
  %v409 = vsel %vm369, %v331, %v401
  %v410 = vsel %vm370, %v336, %v402
  %v411 = vsel %vm371, %v341, %v403
  %v412 = vsel %vm372, %v346, %v404
  %v413 = vsel %vm373, %v351, %v405
  %v414 = vsel %vm374, %v356, %v406
  %v415 = vsel %vm375, %v361, %v407
  %v416 = vsel %vm376, %v366, %v408
  %417 = vmatprep.subr.mxu0 0.0
  %418 = vmatpush1.msra.mxu0 %v409
  %419 = vmatprep.subr.mxu0 0.0
  %420 = vmatpush1.msra.mxu0 %v410
  %421 = vmatprep.subr.mxu0 0.0
  %422 = vmatpush1.msra.mxu0 %v411
  %423 = vmatprep.subr.mxu0 0.0
  %424 = vmatpush1.msra.mxu0 %v412
  %425 = vmatprep.subr.mxu0 0.0
  %426 = vmatpush1.msra.mxu0 %v413
  %427 = vmatprep.subr.mxu0 0.0
  %428 = vmatpush1.msra.mxu0 %v414
  %429 = vmatprep.subr.mxu0 0.0
  %430 = vmatpush1.msra.mxu0 %v415
  %431 = vmatprep.subr.mxu0 0.0
  %432 = vmatpush1.msra.mxu0 %v416
  %433 = vmatprep.subr.mxu0 0.0
  %434 = vmatpush1.msra.mxu0 0.0
  %435 = vmatprep.subr.mxu0 0.0
  %436 = vmatpush1.msra.mxu0 0.0
  %437 = vmatprep.subr.mxu0 0.0
  %438 = vmatpush1.msra.mxu0 0.0
  %439 = vmatprep.subr.mxu0 0.0
  %440 = vmatpush1.msra.mxu0 0.0
  %441 = vmatprep.subr.mxu0 0.0
  %442 = vmatpush1.msra.mxu0 0.0
  %443 = vmatprep.subr.mxu0 0.0
  %444 = vmatpush1.msra.mxu0 0.0
  %445 = vmatprep.subr.mxu0 0.0
  %446 = vmatpush1.msra.mxu0 0.0
  %447 = vmatprep.subr.mxu0 0.0
  %448 = vmatpush1.msra.mxu0 0.0
  %449 = vmatprep.subr.mxu0 0.0
  %450 = vmatpush1.msra.mxu0 0.0
  %451 = vmatprep.subr.mxu0 0.0
  %452 = vmatpush1.msra.mxu0 0.0
  %453 = vmatprep.subr.mxu0 0.0
  %454 = vmatpush1.msra.mxu0 0.0
  %455 = vmatprep.subr.mxu0 0.0
  %456 = vmatpush1.msra.mxu0 0.0
  %457 = vmatprep.subr.mxu0 0.0
  %458 = vmatpush1.msra.mxu0 0.0
  %459 = vmatprep.subr.mxu0 0.0
  %460 = vmatpush1.msra.mxu0 0.0
  %461 = vmatprep.subr.mxu0 0.0
  %462 = vmatpush1.msra.mxu0 0.0
  %463 = vmatprep.subr.mxu0 0.0
  %464 = vmatpush1.msra.mxu0 0.0
  %465 = vmatprep.subr.mxu0 0.0
  %466 = vmatpush1.msra.mxu0 0.0
  %467 = vmatprep.subr.mxu0 0.0
  %468 = vmatpush1.msra.mxu0 0.0
  %469 = vmatprep.subr.mxu0 0.0
  %470 = vmatpush1.msra.mxu0 0.0
  %471 = vmatprep.subr.mxu0 0.0
  %472 = vmatpush1.msra.mxu0 0.0
  %473 = vmatprep.subr.mxu0 0.0
  %474 = vmatpush1.msra.mxu0 0.0
  %475 = vmatprep.subr.mxu0 0.0
  %476 = vmatpush1.msra.mxu0 0.0
  %477 = vmatprep.subr.mxu0 0.0
  %478 = vmatpush1.msra.mxu0 0.0
  %479 = vmatprep.subr.mxu0 0.0
  %480 = vmatpush1.msra.mxu0 0.0
  %481 = vmatprep.mubr.f32.mxu0 0.0
  %482 = vmatmul.mubr.f32.gmra.mrb[0].mxu0 %v56
  %v483 = vpop.f32.mrb[0].mxu0
  %v484 = vadd.f32 0.0, %v483
  %v485 = vpop.f32.mrb[0].mxu0
  %486 = vmatprep.mubr.f32.mxu0 0.0
  %487 = vmatmul.mubr.f32.gmra.mrb[0].mxu0 %v59
  %v488 = vpop.f32.mrb[0].mxu0
  %v489 = vadd.f32 0.0, %v488
  %v490 = vpop.f32.mrb[0].mxu0
  %491 = vmatprep.mubr.f32.mxu0 0.0
  %492 = vmatmul.mubr.f32.gmra.mrb[0].mxu0 %v62
  %v493 = vpop.f32.mrb[0].mxu0
  %v494 = vadd.f32 0.0, %v493
  %v495 = vpop.f32.mrb[0].mxu0
  %496 = vmatprep.mubr.f32.mxu0 0.0
  %497 = vmatmul.mubr.f32.gmra.mrb[0].mxu0 %v65
  %v498 = vpop.f32.mrb[0].mxu0
  %v499 = vadd.f32 0.0, %v498
  %v500 = vpop.f32.mrb[0].mxu0
  %501 = vmatprep.mubr.f32.mxu0 0.0
  %502 = vmatmul.mubr.f32.gmra.mrb[0].mxu0 %v68
  %v503 = vpop.f32.mrb[0].mxu0
  %v504 = vadd.f32 0.0, %v503
  %v505 = vpop.f32.mrb[0].mxu0
  %506 = vmatprep.mubr.f32.mxu0 0.0
  %507 = vmatmul.mubr.f32.gmra.mrb[0].mxu0 %v71
  %v508 = vpop.f32.mrb[0].mxu0
  %v509 = vadd.f32 0.0, %v508
  %v510 = vpop.f32.mrb[0].mxu0
  %511 = vmatprep.mubr.f32.mxu0 0.0
  %512 = vmatmul.mubr.f32.gmra.mrb[0].mxu0 %v74
  %v513 = vpop.f32.mrb[0].mxu0
  %v514 = vadd.f32 0.0, %v513
  %v515 = vpop.f32.mrb[0].mxu0
  %516 = vmatprep.mubr.f32.mxu0 0.0
  %517 = vmatmul.mubr.f32.gmra.mrb[0].mxu0 %v77
  %v518 = vpop.f32.mrb[0].mxu0
  %v519 = vadd.f32 0.0, %v518
  %v520 = vpop.f32.mrb[0].mxu0
  %521 = vdwg.mxu0
  %530 = vrot.lane.b32.xlu0 %v484, 32
  %v531 = vpop.permute.xlu0 %530
  %532 = vrot.lane.b32.xlu0 %v489, 32
  %v533 = vpop.permute.xlu0 %532
  %534 = vrot.lane.b32.xlu0 %v494, 32
  %v535 = vpop.permute.xlu0 %534
  %536 = vrot.lane.b32.xlu0 %v499, 32
  %v537 = vpop.permute.xlu0 %536
  %538 = vrot.lane.b32.xlu0 %v504, 32
  %v539 = vpop.permute.xlu0 %538
  %540 = vrot.lane.b32.xlu0 %v509, 32
  %v541 = vpop.permute.xlu0 %540
  %542 = vrot.lane.b32.xlu0 %v514, 32
  %v543 = vpop.permute.xlu0 %542
  %544 = vrot.lane.b32.xlu0 %v519, 32
  %v545 = vpop.permute.xlu0 %544
  %v554 = vsel %vm216, %v409, %v531
  %v555 = vsel %vm216, %v410, %v533
  %v556 = vsel %vm216, %v411, %v535
  %v557 = vsel %vm216, %v412, %v537
  %v558 = vsel %vm216, %v413, %v539
  %v559 = vsel %vm216, %v414, %v541
  %v560 = vsel %vm216, %v415, %v543
  %v561 = vsel %vm216, %v416, %v545
  %v562 = vld [vmem:[%s4] sm:$0xff]
  %v563 = vld [vmem:[%s4 + $0x8] sm:$0xff]
  %v564 = vld [vmem:[%s4 + $0x10] sm:$0xff]
  %v565 = vld [vmem:[%s4 + $0x18] sm:$0xff]
  %v566 = vld [vmem:[%s4 + $0x20] sm:$0xff]
  %v567 = vld [vmem:[%s4 + $0x28] sm:$0xff]
  %v568 = vld [vmem:[%s4 + $0x30] sm:$0xff]
  %v569 = vld [vmem:[%s4 + $0x38] sm:$0xff]
  %v570 = vld [vmem:[%s5] sm:$0x1]
  %v572 = vlaneseq
  %v573 = vshrl.u32 %v572, 7
  %v574 = vsub.s32 0, %v573
  %v575 = vrot.slane %v570, %v574
  %v578 = vsel %vm54, %v554, 0
  %v581 = vsel %vm54, %v555, 0
  %v584 = vsel %vm54, %v556, 0
  %v587 = vsel %vm54, %v557, 0
  %v590 = vsel %vm54, %v558, 0
  %v593 = vsel %vm54, %v559, 0
  %v596 = vsel %vm54, %v560, 0
  %v599 = vsel %vm54, %v561, 0
  %601 = vmatprep.subr.mxu0 0.0
  %602 = vmatpush1.msra.mxu0 %v562
  %603 = vmatprep.subr.mxu0 0.0
  %604 = vmatpush1.msra.mxu0 %v563
  %605 = vmatprep.subr.mxu0 0.0
  %606 = vmatpush1.msra.mxu0 %v564
  %607 = vmatprep.subr.mxu0 0.0
  %608 = vmatpush1.msra.mxu0 %v565
  %609 = vmatprep.subr.mxu0 0.0
  %610 = vmatpush1.msra.mxu0 %v566
  %611 = vmatprep.subr.mxu0 0.0
  %612 = vmatpush1.msra.mxu0 %v567
  %613 = vmatprep.subr.mxu0 0.0
  %614 = vmatpush1.msra.mxu0 %v568
  %615 = vmatprep.subr.mxu0 0.0
  %616 = vmatpush1.msra.mxu0 %v569
  %617 = vmatprep.subr.mxu0 0.0
  %618 = vmatpush1.msra.mxu0 0.0
  %619 = vmatprep.subr.mxu0 0.0
  %620 = vmatpush1.msra.mxu0 0.0
  %621 = vmatprep.subr.mxu0 0.0
  %622 = vmatpush1.msra.mxu0 0.0
  %623 = vmatprep.subr.mxu0 0.0
  %624 = vmatpush1.msra.mxu0 0.0
  %625 = vmatprep.subr.mxu0 0.0
  %626 = vmatpush1.msra.mxu0 0.0
  %627 = vmatprep.subr.mxu0 0.0
  %628 = vmatpush1.msra.mxu0 0.0
  %629 = vmatprep.subr.mxu0 0.0
  %630 = vmatpush1.msra.mxu0 0.0
  %631 = vmatprep.subr.mxu0 0.0
  %632 = vmatpush1.msra.mxu0 0.0
  %633 = vmatprep.subr.mxu0 0.0
  %634 = vmatpush1.msra.mxu0 0.0
  %635 = vmatprep.subr.mxu0 0.0
  %636 = vmatpush1.msra.mxu0 0.0
  %637 = vmatprep.subr.mxu0 0.0
  %638 = vmatpush1.msra.mxu0 0.0
  %639 = vmatprep.subr.mxu0 0.0
  %640 = vmatpush1.msra.mxu0 0.0
  %641 = vmatprep.subr.mxu0 0.0
  %642 = vmatpush1.msra.mxu0 0.0
  %643 = vmatprep.subr.mxu0 0.0
  %644 = vmatpush1.msra.mxu0 0.0
  %645 = vmatprep.subr.mxu0 0.0
  %646 = vmatpush1.msra.mxu0 0.0
  %647 = vmatprep.subr.mxu0 0.0
  %648 = vmatpush1.msra.mxu0 0.0
  %649 = vmatprep.subr.mxu0 0.0
  %650 = vmatpush1.msra.mxu0 0.0
  %651 = vmatprep.subr.mxu0 0.0
  %652 = vmatpush1.msra.mxu0 0.0
  %653 = vmatprep.subr.mxu0 0.0
  %654 = vmatpush1.msra.mxu0 0.0
  %655 = vmatprep.subr.mxu0 0.0
  %656 = vmatpush1.msra.mxu0 0.0
  %657 = vmatprep.subr.mxu0 0.0
  %658 = vmatpush1.msra.mxu0 0.0
  %659 = vmatprep.subr.mxu0 0.0
  %660 = vmatpush1.msra.mxu0 0.0
  %661 = vmatprep.subr.mxu0 0.0
  %662 = vmatpush1.msra.mxu0 0.0
  %663 = vmatprep.subr.mxu0 0.0
  %664 = vmatpush1.msra.mxu0 0.0
  %665 = vmatprep.mubr.f32.mxu0 0.0
  %666 = vmatmul.mubr.f32.gmra.mrb[0].mxu0 %v578
  %v667 = vpop.f32.mrb[0].mxu0
  %v668 = vadd.f32 %v575, %v667
  %v669 = vpop.f32.mrb[0].mxu0
  %670 = vmatprep.mubr.f32.mxu0 0.0
  %671 = vmatmul.mubr.f32.gmra.mrb[0].mxu0 %v581
  %v672 = vpop.f32.mrb[0].mxu0
  %v673 = vadd.f32 %v575, %v672
  %v674 = vpop.f32.mrb[0].mxu0
  %675 = vmatprep.mubr.f32.mxu0 0.0
  %676 = vmatmul.mubr.f32.gmra.mrb[0].mxu0 %v584
  %v677 = vpop.f32.mrb[0].mxu0
  %v678 = vadd.f32 %v575, %v677
  %v679 = vpop.f32.mrb[0].mxu0
  %680 = vmatprep.mubr.f32.mxu0 0.0
  %681 = vmatmul.mubr.f32.gmra.mrb[0].mxu0 %v587
  %v682 = vpop.f32.mrb[0].mxu0
  %v683 = vadd.f32 %v575, %v682
  %v684 = vpop.f32.mrb[0].mxu0
  %685 = vmatprep.mubr.f32.mxu0 0.0
  %686 = vmatmul.mubr.f32.gmra.mrb[0].mxu0 %v590
  %v687 = vpop.f32.mrb[0].mxu0
  %v688 = vadd.f32 %v575, %v687
  %v689 = vpop.f32.mrb[0].mxu0
  %690 = vmatprep.mubr.f32.mxu0 0.0
  %691 = vmatmul.mubr.f32.gmra.mrb[0].mxu0 %v593
  %v692 = vpop.f32.mrb[0].mxu0
  %v693 = vadd.f32 %v575, %v692
  %v694 = vpop.f32.mrb[0].mxu0
  %695 = vmatprep.mubr.f32.mxu0 0.0
  %696 = vmatmul.mubr.f32.gmra.mrb[0].mxu0 %v596
  %v697 = vpop.f32.mrb[0].mxu0
  %v698 = vadd.f32 %v575, %v697
  %v699 = vpop.f32.mrb[0].mxu0
  %700 = vmatprep.mubr.f32.mxu0 0.0
  %701 = vmatmul.mubr.f32.gmra.mrb[0].mxu0 %v599
  %v702 = vpop.f32.mrb[0].mxu0
  %v703 = vadd.f32 %v575, %v702
  %v704 = vpop.f32.mrb[0].mxu0
  %705 = vdwg.mxu0
  %vm706 = vcmp.gt.f32.partialorder %v668, 0.0
  %vm707 = vcmp.gt.f32.partialorder %v673, 0.0
  %vm708 = vcmp.gt.f32.partialorder %v678, 0.0
  %vm709 = vcmp.gt.f32.partialorder %v683, 0.0
  %vm710 = vcmp.gt.f32.partialorder %v688, 0.0
  %vm711 = vcmp.gt.f32.partialorder %v693, 0.0
  %vm712 = vcmp.gt.f32.partialorder %v698, 0.0
  %vm713 = vcmp.gt.f32.partialorder %v703, 0.0
  %v714 = vmin.f32 %v668, 0.0
  %v715 = vmin.f32 %v673, 0.0
  %v716 = vmin.f32 %v678, 0.0
  %v717 = vmin.f32 %v683, 0.0
  %v718 = vmin.f32 %v688, 0.0
  %v719 = vmin.f32 %v693, 0.0
  %v720 = vmin.f32 %v698, 0.0
  %v721 = vmin.f32 %v703, 0.0
  %v722 = vmul.f32 %v714, 1.442695
  %v723 = vpow.pop %v722
  %v724 = vmul.f32 %v715, 1.442695
  %v725 = vpow.pop %v724
  %v726 = vmul.f32 %v716, 1.442695
  %v727 = vpow.pop %v726
  %v728 = vmul.f32 %v717, 1.442695
  %v729 = vpow.pop %v728
  %v730 = vmul.f32 %v718, 1.442695
  %v731 = vpow.pop %v730
  %v732 = vmul.f32 %v719, 1.442695
  %v733 = vpow.pop %v732
  %v734 = vmul.f32 %v720, 1.442695
  %v735 = vpow.pop %v734
  %v736 = vmul.f32 %v721, 1.442695
  %v737 = vpow.pop %v736
  %v738 = vsub.f32 %v723, 1.0
  %v739 = vsub.f32 %v725, 1.0
  %v740 = vsub.f32 %v727, 1.0
  %v741 = vsub.f32 %v729, 1.0
  %v742 = vsub.f32 %v731, 1.0
  %v743 = vsub.f32 %v733, 1.0
  %v744 = vsub.f32 %v735, 1.0
  %v745 = vsub.f32 %v737, 1.0
  %v746 = vsel %vm706, %v668, %v738
  %v747 = vsel %vm707, %v673, %v739
  %v748 = vsel %vm708, %v678, %v740
  %v749 = vsel %vm709, %v683, %v741
  %v750 = vsel %vm710, %v688, %v742
  %v751 = vsel %vm711, %v693, %v743
  %v752 = vsel %vm712, %v698, %v744
  %v753 = vsel %vm713, %v703, %v745
  %s754 = scalar_lea.vmem %s0, 64
  %v755 = vld [vmem:[%s754] sm:$0xff]
  %v756 = vld [vmem:[%s754 + $0x8] sm:$0xff]
  %v757 = vld [vmem:[%s754 + $0x10] sm:$0xff]
  %v758 = vld [vmem:[%s754 + $0x18] sm:$0xff]
  %v759 = vld [vmem:[%s754 + $0x20] sm:$0xff]
  %v760 = vld [vmem:[%s754 + $0x28] sm:$0xff]
  %v761 = vld [vmem:[%s754 + $0x30] sm:$0xff]
  %v762 = vld [vmem:[%s754 + $0x38] sm:$0xff]
  %v764 = vsel %vm54, %v755, 0
  %v767 = vsel %vm54, %v756, 0
  %v770 = vsel %vm54, %v757, 0
  %v773 = vsel %vm54, %v758, 0
  %v776 = vsel %vm54, %v759, 0
  %v779 = vsel %vm54, %v760, 0
  %v782 = vsel %vm54, %v761, 0
  %v785 = vsel %vm54, %v762, 0
  %787 = vmatprep.subr.mxu0 0.0
  %788 = vmatpush1.msra.mxu0 %v38
  %789 = vmatprep.subr.mxu0 0.0
  %790 = vmatpush1.msra.mxu0 %v39
  %791 = vmatprep.subr.mxu0 0.0
  %792 = vmatpush1.msra.mxu0 %v40
  %793 = vmatprep.subr.mxu0 0.0
  %794 = vmatpush1.msra.mxu0 %v41
  %795 = vmatprep.subr.mxu0 0.0
  %796 = vmatpush1.msra.mxu0 %v42
  %797 = vmatprep.subr.mxu0 0.0
  %798 = vmatpush1.msra.mxu0 %v43
  %799 = vmatprep.subr.mxu0 0.0
  %800 = vmatpush1.msra.mxu0 %v44
  %801 = vmatprep.subr.mxu0 0.0
  %802 = vmatpush1.msra.mxu0 %v45
  %803 = vmatprep.subr.mxu0 0.0
  %804 = vmatpush1.msra.mxu0 0.0
  %805 = vmatprep.subr.mxu0 0.0
  %806 = vmatpush1.msra.mxu0 0.0
  %807 = vmatprep.subr.mxu0 0.0
  %808 = vmatpush1.msra.mxu0 0.0
  %809 = vmatprep.subr.mxu0 0.0
  %810 = vmatpush1.msra.mxu0 0.0
  %811 = vmatprep.subr.mxu0 0.0
  %812 = vmatpush1.msra.mxu0 0.0
  %813 = vmatprep.subr.mxu0 0.0
  %814 = vmatpush1.msra.mxu0 0.0
  %815 = vmatprep.subr.mxu0 0.0
  %816 = vmatpush1.msra.mxu0 0.0
  %817 = vmatprep.subr.mxu0 0.0
  %818 = vmatpush1.msra.mxu0 0.0
  %819 = vmatprep.subr.mxu0 0.0
  %820 = vmatpush1.msra.mxu0 0.0
  %821 = vmatprep.subr.mxu0 0.0
  %822 = vmatpush1.msra.mxu0 0.0
  %823 = vmatprep.subr.mxu0 0.0
  %824 = vmatpush1.msra.mxu0 0.0
  %825 = vmatprep.subr.mxu0 0.0
  %826 = vmatpush1.msra.mxu0 0.0
  %827 = vmatprep.subr.mxu0 0.0
  %828 = vmatpush1.msra.mxu0 0.0
  %829 = vmatprep.subr.mxu0 0.0
  %830 = vmatpush1.msra.mxu0 0.0
  %831 = vmatprep.subr.mxu0 0.0
  %832 = vmatpush1.msra.mxu0 0.0
  %833 = vmatprep.subr.mxu0 0.0
  %834 = vmatpush1.msra.mxu0 0.0
  %835 = vmatprep.subr.mxu0 0.0
  %836 = vmatpush1.msra.mxu0 0.0
  %837 = vmatprep.subr.mxu0 0.0
  %838 = vmatpush1.msra.mxu0 0.0
  %839 = vmatprep.subr.mxu0 0.0
  %840 = vmatpush1.msra.mxu0 0.0
  %841 = vmatprep.subr.mxu0 0.0
  %842 = vmatpush1.msra.mxu0 0.0
  %843 = vmatprep.subr.mxu0 0.0
  %844 = vmatpush1.msra.mxu0 0.0
  %845 = vmatprep.subr.mxu0 0.0
  %846 = vmatpush1.msra.mxu0 0.0
  %847 = vmatprep.subr.mxu0 0.0
  %848 = vmatpush1.msra.mxu0 0.0
  %849 = vmatprep.subr.mxu0 0.0
  %850 = vmatpush1.msra.mxu0 0.0
  %851 = vmatprep.mubr.f32.mxu0 0.0
  %852 = vmatmul.mubr.f32.gmra.mrb[0].mxu0 %v764
  %v853 = vpop.f32.mrb[0].mxu0
  %v854 = vadd.f32 0.0, %v853
  %v855 = vpop.f32.mrb[0].mxu0
  %856 = vmatprep.mubr.f32.mxu0 0.0
  %857 = vmatmul.mubr.f32.gmra.mrb[0].mxu0 %v767
  %v858 = vpop.f32.mrb[0].mxu0
  %v859 = vadd.f32 0.0, %v858
  %v860 = vpop.f32.mrb[0].mxu0
  %861 = vmatprep.mubr.f32.mxu0 0.0
  %862 = vmatmul.mubr.f32.gmra.mrb[0].mxu0 %v770
  %v863 = vpop.f32.mrb[0].mxu0
  %v864 = vadd.f32 0.0, %v863
  %v865 = vpop.f32.mrb[0].mxu0
  %866 = vmatprep.mubr.f32.mxu0 0.0
  %867 = vmatmul.mubr.f32.gmra.mrb[0].mxu0 %v773
  %v868 = vpop.f32.mrb[0].mxu0
  %v869 = vadd.f32 0.0, %v868
  %v870 = vpop.f32.mrb[0].mxu0
  %871 = vmatprep.mubr.f32.mxu0 0.0
  %872 = vmatmul.mubr.f32.gmra.mrb[0].mxu0 %v776
  %v873 = vpop.f32.mrb[0].mxu0
  %v874 = vadd.f32 0.0, %v873
  %v875 = vpop.f32.mrb[0].mxu0
  %876 = vmatprep.mubr.f32.mxu0 0.0
  %877 = vmatmul.mubr.f32.gmra.mrb[0].mxu0 %v779
  %v878 = vpop.f32.mrb[0].mxu0
  %v879 = vadd.f32 0.0, %v878
  %v880 = vpop.f32.mrb[0].mxu0
  %881 = vmatprep.mubr.f32.mxu0 0.0
  %882 = vmatmul.mubr.f32.gmra.mrb[0].mxu0 %v782
  %v883 = vpop.f32.mrb[0].mxu0
  %v884 = vadd.f32 0.0, %v883
  %v885 = vpop.f32.mrb[0].mxu0
  %886 = vmatprep.mubr.f32.mxu0 0.0
  %887 = vmatmul.mubr.f32.gmra.mrb[0].mxu0 %v785
  %v888 = vpop.f32.mrb[0].mxu0
  %v889 = vadd.f32 0.0, %v888
  %v890 = vpop.f32.mrb[0].mxu0
  %891 = vdwg.mxu0
  %900 = vrot.lane.b32.xlu0 %v854, 32
  %v901 = vpop.permute.xlu0 %900
  %902 = vrot.lane.b32.xlu0 %v859, 32
  %v903 = vpop.permute.xlu0 %902
  %904 = vrot.lane.b32.xlu0 %v864, 32
  %v905 = vpop.permute.xlu0 %904
  %906 = vrot.lane.b32.xlu0 %v869, 32
  %v907 = vpop.permute.xlu0 %906
  %908 = vrot.lane.b32.xlu0 %v874, 32
  %v909 = vpop.permute.xlu0 %908
  %910 = vrot.lane.b32.xlu0 %v879, 32
  %v911 = vpop.permute.xlu0 %910
  %912 = vrot.lane.b32.xlu0 %v884, 32
  %v913 = vpop.permute.xlu0 %912
  %914 = vrot.lane.b32.xlu0 %v889, 32
  %v915 = vpop.permute.xlu0 %914
  %v924 = vsel %vm216, %v38, %v901
  %v925 = vsel %vm216, %v39, %v903
  %v926 = vsel %vm216, %v40, %v905
  %v927 = vsel %vm216, %v41, %v907
  %v928 = vsel %vm216, %v42, %v909
  %v929 = vsel %vm216, %v43, %v911
  %v930 = vsel %vm216, %v44, %v913
  %v931 = vsel %vm216, %v45, %v915
  %s932 = scalar_lea.vmem %s2, 64
  %v933 = vld [vmem:[%s932] sm:$0xff]
  %v934 = vld [vmem:[%s932 + $0x8] sm:$0xff]
  %v935 = vld [vmem:[%s932 + $0x10] sm:$0xff]
  %v936 = vld [vmem:[%s932 + $0x18] sm:$0xff]
  %v937 = vld [vmem:[%s932 + $0x20] sm:$0xff]
  %v938 = vld [vmem:[%s932 + $0x28] sm:$0xff]
  %v939 = vld [vmem:[%s932 + $0x30] sm:$0xff]
  %v940 = vld [vmem:[%s932 + $0x38] sm:$0xff]
  %s941 = scalar_lea.vmem %s3, 1
  %v942 = vld [vmem:[%s941] sm:$0x1]
  %v944 = vlaneseq
  %v945 = vshrl.u32 %v944, 7
  %v946 = vsub.s32 0, %v945
  %v947 = vrot.slane %v942, %v946
  %v950 = vsel %vm54, %v924, 0
  %v953 = vsel %vm54, %v925, 0
  %v956 = vsel %vm54, %v926, 0
  %v959 = vsel %vm54, %v927, 0
  %v962 = vsel %vm54, %v928, 0
  %v965 = vsel %vm54, %v929, 0
  %v968 = vsel %vm54, %v930, 0
  %v971 = vsel %vm54, %v931, 0
  %973 = vmatprep.subr.mxu0 0.0
  %974 = vmatpush1.msra.mxu0 %v933
  %975 = vmatprep.subr.mxu0 0.0
  %976 = vmatpush1.msra.mxu0 %v934
  %977 = vmatprep.subr.mxu0 0.0
  %978 = vmatpush1.msra.mxu0 %v935
  %979 = vmatprep.subr.mxu0 0.0
  %980 = vmatpush1.msra.mxu0 %v936
  %981 = vmatprep.subr.mxu0 0.0
  %982 = vmatpush1.msra.mxu0 %v937
  %983 = vmatprep.subr.mxu0 0.0
  %984 = vmatpush1.msra.mxu0 %v938
  %985 = vmatprep.subr.mxu0 0.0
  %986 = vmatpush1.msra.mxu0 %v939
  %987 = vmatprep.subr.mxu0 0.0
  %988 = vmatpush1.msra.mxu0 %v940
  %989 = vmatprep.subr.mxu0 0.0
  %990 = vmatpush1.msra.mxu0 0.0
  %991 = vmatprep.subr.mxu0 0.0
  %992 = vmatpush1.msra.mxu0 0.0
  %993 = vmatprep.subr.mxu0 0.0
  %994 = vmatpush1.msra.mxu0 0.0
  %995 = vmatprep.subr.mxu0 0.0
  %996 = vmatpush1.msra.mxu0 0.0
  %997 = vmatprep.subr.mxu0 0.0
  %998 = vmatpush1.msra.mxu0 0.0
  %999 = vmatprep.subr.mxu0 0.0
  %1000 = vmatpush1.msra.mxu0 0.0
  %1001 = vmatprep.subr.mxu0 0.0
  %1002 = vmatpush1.msra.mxu0 0.0
  %1003 = vmatprep.subr.mxu0 0.0
  %1004 = vmatpush1.msra.mxu0 0.0
  %1005 = vmatprep.subr.mxu0 0.0
  %1006 = vmatpush1.msra.mxu0 0.0
  %1007 = vmatprep.subr.mxu0 0.0
  %1008 = vmatpush1.msra.mxu0 0.0
  %1009 = vmatprep.subr.mxu0 0.0
  %1010 = vmatpush1.msra.mxu0 0.0
  %1011 = vmatprep.subr.mxu0 0.0
  %1012 = vmatpush1.msra.mxu0 0.0
  %1013 = vmatprep.subr.mxu0 0.0
  %1014 = vmatpush1.msra.mxu0 0.0
  %1015 = vmatprep.subr.mxu0 0.0
  %1016 = vmatpush1.msra.mxu0 0.0
  %1017 = vmatprep.subr.mxu0 0.0
  %1018 = vmatpush1.msra.mxu0 0.0
  %1019 = vmatprep.subr.mxu0 0.0
  %1020 = vmatpush1.msra.mxu0 0.0
  %1021 = vmatprep.subr.mxu0 0.0
  %1022 = vmatpush1.msra.mxu0 0.0
  %1023 = vmatprep.subr.mxu0 0.0
  %1024 = vmatpush1.msra.mxu0 0.0
  %1025 = vmatprep.subr.mxu0 0.0
  %1026 = vmatpush1.msra.mxu0 0.0
  %1027 = vmatprep.subr.mxu0 0.0
  %1028 = vmatpush1.msra.mxu0 0.0
  %1029 = vmatprep.subr.mxu0 0.0
  %1030 = vmatpush1.msra.mxu0 0.0
  %1031 = vmatprep.subr.mxu0 0.0
  %1032 = vmatpush1.msra.mxu0 0.0
  %1033 = vmatprep.subr.mxu0 0.0
  %1034 = vmatpush1.msra.mxu0 0.0
  %1035 = vmatprep.subr.mxu0 0.0
  %1036 = vmatpush1.msra.mxu0 0.0
  %1037 = vmatprep.mubr.f32.mxu0 0.0
  %1038 = vmatmul.mubr.f32.gmra.mrb[0].mxu0 %v950
  %v1039 = vpop.f32.mrb[0].mxu0
  %v1040 = vadd.f32 %v947, %v1039
  %v1041 = vpop.f32.mrb[0].mxu0
  %1042 = vmatprep.mubr.f32.mxu0 0.0
  %1043 = vmatmul.mubr.f32.gmra.mrb[0].mxu0 %v953
  %v1044 = vpop.f32.mrb[0].mxu0
  %v1045 = vadd.f32 %v947, %v1044
  %v1046 = vpop.f32.mrb[0].mxu0
  %1047 = vmatprep.mubr.f32.mxu0 0.0
  %1048 = vmatmul.mubr.f32.gmra.mrb[0].mxu0 %v956
  %v1049 = vpop.f32.mrb[0].mxu0
  %v1050 = vadd.f32 %v947, %v1049
  %v1051 = vpop.f32.mrb[0].mxu0
  %1052 = vmatprep.mubr.f32.mxu0 0.0
  %1053 = vmatmul.mubr.f32.gmra.mrb[0].mxu0 %v959
  %v1054 = vpop.f32.mrb[0].mxu0
  %v1055 = vadd.f32 %v947, %v1054
  %v1056 = vpop.f32.mrb[0].mxu0
  %1057 = vmatprep.mubr.f32.mxu0 0.0
  %1058 = vmatmul.mubr.f32.gmra.mrb[0].mxu0 %v962
  %v1059 = vpop.f32.mrb[0].mxu0
  %v1060 = vadd.f32 %v947, %v1059
  %v1061 = vpop.f32.mrb[0].mxu0
  %1062 = vmatprep.mubr.f32.mxu0 0.0
  %1063 = vmatmul.mubr.f32.gmra.mrb[0].mxu0 %v965
  %v1064 = vpop.f32.mrb[0].mxu0
  %v1065 = vadd.f32 %v947, %v1064
  %v1066 = vpop.f32.mrb[0].mxu0
  %1067 = vmatprep.mubr.f32.mxu0 0.0
  %1068 = vmatmul.mubr.f32.gmra.mrb[0].mxu0 %v968
  %v1069 = vpop.f32.mrb[0].mxu0
  %v1070 = vadd.f32 %v947, %v1069
  %v1071 = vpop.f32.mrb[0].mxu0
  %1072 = vmatprep.mubr.f32.mxu0 0.0
  %1073 = vmatmul.mubr.f32.gmra.mrb[0].mxu0 %v971
  %v1074 = vpop.f32.mrb[0].mxu0
  %v1075 = vadd.f32 %v947, %v1074
  %v1076 = vpop.f32.mrb[0].mxu0
  %1077 = vdwg.mxu0
  %vm1078 = vcmp.gt.f32.partialorder %v1040, 0.0
  %vm1079 = vcmp.gt.f32.partialorder %v1045, 0.0
  %vm1080 = vcmp.gt.f32.partialorder %v1050, 0.0
  %vm1081 = vcmp.gt.f32.partialorder %v1055, 0.0
  %vm1082 = vcmp.gt.f32.partialorder %v1060, 0.0
  %vm1083 = vcmp.gt.f32.partialorder %v1065, 0.0
  %vm1084 = vcmp.gt.f32.partialorder %v1070, 0.0
  %vm1085 = vcmp.gt.f32.partialorder %v1075, 0.0
  %v1086 = vmin.f32 %v1040, 0.0
  %v1087 = vmin.f32 %v1045, 0.0
  %v1088 = vmin.f32 %v1050, 0.0
  %v1089 = vmin.f32 %v1055, 0.0
  %v1090 = vmin.f32 %v1060, 0.0
  %v1091 = vmin.f32 %v1065, 0.0
  %v1092 = vmin.f32 %v1070, 0.0
  %v1093 = vmin.f32 %v1075, 0.0
  %v1094 = vmul.f32 %v1086, 1.442695
  %v1095 = vpow.pop %v1094
  %v1096 = vmul.f32 %v1087, 1.442695
  %v1097 = vpow.pop %v1096
  %v1098 = vmul.f32 %v1088, 1.442695
  %v1099 = vpow.pop %v1098
  %v1100 = vmul.f32 %v1089, 1.442695
  %v1101 = vpow.pop %v1100
  %v1102 = vmul.f32 %v1090, 1.442695
  %v1103 = vpow.pop %v1102
  %v1104 = vmul.f32 %v1091, 1.442695
  %v1105 = vpow.pop %v1104
  %v1106 = vmul.f32 %v1092, 1.442695
  %v1107 = vpow.pop %v1106
  %v1108 = vmul.f32 %v1093, 1.442695
  %v1109 = vpow.pop %v1108
  %v1110 = vsub.f32 %v1095, 1.0
  %v1111 = vsub.f32 %v1097, 1.0
  %v1112 = vsub.f32 %v1099, 1.0
  %v1113 = vsub.f32 %v1101, 1.0
  %v1114 = vsub.f32 %v1103, 1.0
  %v1115 = vsub.f32 %v1105, 1.0
  %v1116 = vsub.f32 %v1107, 1.0
  %v1117 = vsub.f32 %v1109, 1.0
  %v1118 = vsel %vm1078, %v1040, %v1110
  %v1119 = vsel %vm1079, %v1045, %v1111
  %v1120 = vsel %vm1080, %v1050, %v1112
  %v1121 = vsel %vm1081, %v1055, %v1113
  %v1122 = vsel %vm1082, %v1060, %v1114
  %v1123 = vsel %vm1083, %v1065, %v1115
  %v1124 = vsel %vm1084, %v1070, %v1116
  %v1125 = vsel %vm1085, %v1075, %v1117
  %1126 = vmatprep.subr.mxu0 0.0
  %1127 = vmatpush1.msra.mxu0 %v1118
  %1128 = vmatprep.subr.mxu0 0.0
  %1129 = vmatpush1.msra.mxu0 %v1119
  %1130 = vmatprep.subr.mxu0 0.0
  %1131 = vmatpush1.msra.mxu0 %v1120
  %1132 = vmatprep.subr.mxu0 0.0
  %1133 = vmatpush1.msra.mxu0 %v1121
  %1134 = vmatprep.subr.mxu0 0.0
  %1135 = vmatpush1.msra.mxu0 %v1122
  %1136 = vmatprep.subr.mxu0 0.0
  %1137 = vmatpush1.msra.mxu0 %v1123
  %1138 = vmatprep.subr.mxu0 0.0
  %1139 = vmatpush1.msra.mxu0 %v1124
  %1140 = vmatprep.subr.mxu0 0.0
  %1141 = vmatpush1.msra.mxu0 %v1125
  %1142 = vmatprep.subr.mxu0 0.0
  %1143 = vmatpush1.msra.mxu0 0.0
  %1144 = vmatprep.subr.mxu0 0.0
  %1145 = vmatpush1.msra.mxu0 0.0
  %1146 = vmatprep.subr.mxu0 0.0
  %1147 = vmatpush1.msra.mxu0 0.0
  %1148 = vmatprep.subr.mxu0 0.0
  %1149 = vmatpush1.msra.mxu0 0.0
  %1150 = vmatprep.subr.mxu0 0.0
  %1151 = vmatpush1.msra.mxu0 0.0
  %1152 = vmatprep.subr.mxu0 0.0
  %1153 = vmatpush1.msra.mxu0 0.0
  %1154 = vmatprep.subr.mxu0 0.0
  %1155 = vmatpush1.msra.mxu0 0.0
  %1156 = vmatprep.subr.mxu0 0.0
  %1157 = vmatpush1.msra.mxu0 0.0
  %1158 = vmatprep.subr.mxu0 0.0
  %1159 = vmatpush1.msra.mxu0 0.0
  %1160 = vmatprep.subr.mxu0 0.0
  %1161 = vmatpush1.msra.mxu0 0.0
  %1162 = vmatprep.subr.mxu0 0.0
  %1163 = vmatpush1.msra.mxu0 0.0
  %1164 = vmatprep.subr.mxu0 0.0
  %1165 = vmatpush1.msra.mxu0 0.0
  %1166 = vmatprep.subr.mxu0 0.0
  %1167 = vmatpush1.msra.mxu0 0.0
  %1168 = vmatprep.subr.mxu0 0.0
  %1169 = vmatpush1.msra.mxu0 0.0
  %1170 = vmatprep.subr.mxu0 0.0
  %1171 = vmatpush1.msra.mxu0 0.0
  %1172 = vmatprep.subr.mxu0 0.0
  %1173 = vmatpush1.msra.mxu0 0.0
  %1174 = vmatprep.subr.mxu0 0.0
  %1175 = vmatpush1.msra.mxu0 0.0
  %1176 = vmatprep.subr.mxu0 0.0
  %1177 = vmatpush1.msra.mxu0 0.0
  %1178 = vmatprep.subr.mxu0 0.0
  %1179 = vmatpush1.msra.mxu0 0.0
  %1180 = vmatprep.subr.mxu0 0.0
  %1181 = vmatpush1.msra.mxu0 0.0
  %1182 = vmatprep.subr.mxu0 0.0
  %1183 = vmatpush1.msra.mxu0 0.0
  %1184 = vmatprep.subr.mxu0 0.0
  %1185 = vmatpush1.msra.mxu0 0.0
  %1186 = vmatprep.subr.mxu0 0.0
  %1187 = vmatpush1.msra.mxu0 0.0
  %1188 = vmatprep.subr.mxu0 0.0
  %1189 = vmatpush1.msra.mxu0 0.0
  %1190 = vmatprep.mubr.f32.mxu0 0.0
  %1191 = vmatmul.mubr.f32.gmra.mrb[0].mxu0 %v764
  %v1192 = vpop.f32.mrb[0].mxu0
  %v1193 = vadd.f32 0.0, %v1192
  %v1194 = vpop.f32.mrb[0].mxu0
  %1195 = vmatprep.mubr.f32.mxu0 0.0
  %1196 = vmatmul.mubr.f32.gmra.mrb[0].mxu0 %v767
  %v1197 = vpop.f32.mrb[0].mxu0
  %v1198 = vadd.f32 0.0, %v1197
  %v1199 = vpop.f32.mrb[0].mxu0
  %1200 = vmatprep.mubr.f32.mxu0 0.0
  %1201 = vmatmul.mubr.f32.gmra.mrb[0].mxu0 %v770
  %v1202 = vpop.f32.mrb[0].mxu0
  %v1203 = vadd.f32 0.0, %v1202
  %v1204 = vpop.f32.mrb[0].mxu0
  %1205 = vmatprep.mubr.f32.mxu0 0.0
  %1206 = vmatmul.mubr.f32.gmra.mrb[0].mxu0 %v773
  %v1207 = vpop.f32.mrb[0].mxu0
  %v1208 = vadd.f32 0.0, %v1207
  %v1209 = vpop.f32.mrb[0].mxu0
  %1210 = vmatprep.mubr.f32.mxu0 0.0
  %1211 = vmatmul.mubr.f32.gmra.mrb[0].mxu0 %v776
  %v1212 = vpop.f32.mrb[0].mxu0
  %v1213 = vadd.f32 0.0, %v1212
  %v1214 = vpop.f32.mrb[0].mxu0
  %1215 = vmatprep.mubr.f32.mxu0 0.0
  %1216 = vmatmul.mubr.f32.gmra.mrb[0].mxu0 %v779
  %v1217 = vpop.f32.mrb[0].mxu0
  %v1218 = vadd.f32 0.0, %v1217
  %v1219 = vpop.f32.mrb[0].mxu0
  %1220 = vmatprep.mubr.f32.mxu0 0.0
  %1221 = vmatmul.mubr.f32.gmra.mrb[0].mxu0 %v782
  %v1222 = vpop.f32.mrb[0].mxu0
  %v1223 = vadd.f32 0.0, %v1222
  %v1224 = vpop.f32.mrb[0].mxu0
  %1225 = vmatprep.mubr.f32.mxu0 0.0
  %1226 = vmatmul.mubr.f32.gmra.mrb[0].mxu0 %v785
  %v1227 = vpop.f32.mrb[0].mxu0
  %v1228 = vadd.f32 0.0, %v1227
  %v1229 = vpop.f32.mrb[0].mxu0
  %1230 = vdwg.mxu0
  %1239 = vrot.lane.b32.xlu0 %v1193, 32
  %v1240 = vpop.permute.xlu0 %1239
  %1241 = vrot.lane.b32.xlu0 %v1198, 32
  %v1242 = vpop.permute.xlu0 %1241
  %1243 = vrot.lane.b32.xlu0 %v1203, 32
  %v1244 = vpop.permute.xlu0 %1243
  %1245 = vrot.lane.b32.xlu0 %v1208, 32
  %v1246 = vpop.permute.xlu0 %1245
  %1247 = vrot.lane.b32.xlu0 %v1213, 32
  %v1248 = vpop.permute.xlu0 %1247
  %1249 = vrot.lane.b32.xlu0 %v1218, 32
  %v1250 = vpop.permute.xlu0 %1249
  %1251 = vrot.lane.b32.xlu0 %v1223, 32
  %v1252 = vpop.permute.xlu0 %1251
  %1253 = vrot.lane.b32.xlu0 %v1228, 32
  %v1254 = vpop.permute.xlu0 %1253
  %v1263 = vsel %vm216, %v1118, %v1240
  %v1264 = vsel %vm216, %v1119, %v1242
  %v1265 = vsel %vm216, %v1120, %v1244
  %v1266 = vsel %vm216, %v1121, %v1246
  %v1267 = vsel %vm216, %v1122, %v1248
  %v1268 = vsel %vm216, %v1123, %v1250
  %v1269 = vsel %vm216, %v1124, %v1252
  %v1270 = vsel %vm216, %v1125, %v1254
  %s1271 = scalar_lea.vmem %s4, 64
  %v1272 = vld [vmem:[%s1271] sm:$0xff]
  %v1273 = vld [vmem:[%s1271 + $0x8] sm:$0xff]
  %v1274 = vld [vmem:[%s1271 + $0x10] sm:$0xff]
  %v1275 = vld [vmem:[%s1271 + $0x18] sm:$0xff]
  %v1276 = vld [vmem:[%s1271 + $0x20] sm:$0xff]
  %v1277 = vld [vmem:[%s1271 + $0x28] sm:$0xff]
  %v1278 = vld [vmem:[%s1271 + $0x30] sm:$0xff]
  %v1279 = vld [vmem:[%s1271 + $0x38] sm:$0xff]
  %s1280 = scalar_lea.vmem %s5, 1
  %v1281 = vld [vmem:[%s1280] sm:$0x1]
  %v1283 = vlaneseq
  %v1284 = vshrl.u32 %v1283, 7
  %v1285 = vsub.s32 0, %v1284
  %v1286 = vrot.slane %v1281, %v1285
  %v1289 = vsel %vm54, %v1263, 0
  %v1292 = vsel %vm54, %v1264, 0
  %v1295 = vsel %vm54, %v1265, 0
  %v1298 = vsel %vm54, %v1266, 0
  %v1301 = vsel %vm54, %v1267, 0
  %v1304 = vsel %vm54, %v1268, 0
  %v1307 = vsel %vm54, %v1269, 0
  %v1310 = vsel %vm54, %v1270, 0
  %1312 = vmatprep.subr.mxu0 0.0
  %1313 = vmatpush1.msra.mxu0 %v1272
  %1314 = vmatprep.subr.mxu0 0.0
  %1315 = vmatpush1.msra.mxu0 %v1273
  %1316 = vmatprep.subr.mxu0 0.0
  %1317 = vmatpush1.msra.mxu0 %v1274
  %1318 = vmatprep.subr.mxu0 0.0
  %1319 = vmatpush1.msra.mxu0 %v1275
  %1320 = vmatprep.subr.mxu0 0.0
  %1321 = vmatpush1.msra.mxu0 %v1276
  %1322 = vmatprep.subr.mxu0 0.0
  %1323 = vmatpush1.msra.mxu0 %v1277
  %1324 = vmatprep.subr.mxu0 0.0
  %1325 = vmatpush1.msra.mxu0 %v1278
  %1326 = vmatprep.subr.mxu0 0.0
  %1327 = vmatpush1.msra.mxu0 %v1279
  %1328 = vmatprep.subr.mxu0 0.0
  %1329 = vmatpush1.msra.mxu0 0.0
  %1330 = vmatprep.subr.mxu0 0.0
  %1331 = vmatpush1.msra.mxu0 0.0
  %1332 = vmatprep.subr.mxu0 0.0
  %1333 = vmatpush1.msra.mxu0 0.0
  %1334 = vmatprep.subr.mxu0 0.0
  %1335 = vmatpush1.msra.mxu0 0.0
  %1336 = vmatprep.subr.mxu0 0.0
  %1337 = vmatpush1.msra.mxu0 0.0
  %1338 = vmatprep.subr.mxu0 0.0
  %1339 = vmatpush1.msra.mxu0 0.0
  %1340 = vmatprep.subr.mxu0 0.0
  %1341 = vmatpush1.msra.mxu0 0.0
  %1342 = vmatprep.subr.mxu0 0.0
  %1343 = vmatpush1.msra.mxu0 0.0
  %1344 = vmatprep.subr.mxu0 0.0
  %1345 = vmatpush1.msra.mxu0 0.0
  %1346 = vmatprep.subr.mxu0 0.0
  %1347 = vmatpush1.msra.mxu0 0.0
  %1348 = vmatprep.subr.mxu0 0.0
  %1349 = vmatpush1.msra.mxu0 0.0
  %1350 = vmatprep.subr.mxu0 0.0
  %1351 = vmatpush1.msra.mxu0 0.0
  %1352 = vmatprep.subr.mxu0 0.0
  %1353 = vmatpush1.msra.mxu0 0.0
  %1354 = vmatprep.subr.mxu0 0.0
  %1355 = vmatpush1.msra.mxu0 0.0
  %1356 = vmatprep.subr.mxu0 0.0
  %1357 = vmatpush1.msra.mxu0 0.0
  %1358 = vmatprep.subr.mxu0 0.0
  %1359 = vmatpush1.msra.mxu0 0.0
  %1360 = vmatprep.subr.mxu0 0.0
  %1361 = vmatpush1.msra.mxu0 0.0
  %1362 = vmatprep.subr.mxu0 0.0
  %1363 = vmatpush1.msra.mxu0 0.0
  %1364 = vmatprep.subr.mxu0 0.0
  %1365 = vmatpush1.msra.mxu0 0.0
  %1366 = vmatprep.subr.mxu0 0.0
  %1367 = vmatpush1.msra.mxu0 0.0
  %1368 = vmatprep.subr.mxu0 0.0
  %1369 = vmatpush1.msra.mxu0 0.0
  %1370 = vmatprep.subr.mxu0 0.0
  %1371 = vmatpush1.msra.mxu0 0.0
  %1372 = vmatprep.subr.mxu0 0.0
  %1373 = vmatpush1.msra.mxu0 0.0
  %1374 = vmatprep.subr.mxu0 0.0
  %1375 = vmatpush1.msra.mxu0 0.0
  %1376 = vmatprep.mubr.f32.mxu0 0.0
  %1377 = vmatmul.mubr.f32.gmra.mrb[0].mxu0 %v1289
  %v1378 = vpop.f32.mrb[0].mxu0
  %v1379 = vadd.f32 %v1286, %v1378
  %v1380 = vpop.f32.mrb[0].mxu0
  %1381 = vmatprep.mubr.f32.mxu0 0.0
  %1382 = vmatmul.mubr.f32.gmra.mrb[0].mxu0 %v1292
  %v1383 = vpop.f32.mrb[0].mxu0
  %v1384 = vadd.f32 %v1286, %v1383
  %v1385 = vpop.f32.mrb[0].mxu0
  %1386 = vmatprep.mubr.f32.mxu0 0.0
  %1387 = vmatmul.mubr.f32.gmra.mrb[0].mxu0 %v1295
  %v1388 = vpop.f32.mrb[0].mxu0
  %v1389 = vadd.f32 %v1286, %v1388
  %v1390 = vpop.f32.mrb[0].mxu0
  %1391 = vmatprep.mubr.f32.mxu0 0.0
  %1392 = vmatmul.mubr.f32.gmra.mrb[0].mxu0 %v1298
  %v1393 = vpop.f32.mrb[0].mxu0
  %v1394 = vadd.f32 %v1286, %v1393
  %v1395 = vpop.f32.mrb[0].mxu0
  %1396 = vmatprep.mubr.f32.mxu0 0.0
  %1397 = vmatmul.mubr.f32.gmra.mrb[0].mxu0 %v1301
  %v1398 = vpop.f32.mrb[0].mxu0
  %v1399 = vadd.f32 %v1286, %v1398
  %v1400 = vpop.f32.mrb[0].mxu0
  %1401 = vmatprep.mubr.f32.mxu0 0.0
  %1402 = vmatmul.mubr.f32.gmra.mrb[0].mxu0 %v1304
  %v1403 = vpop.f32.mrb[0].mxu0
  %v1404 = vadd.f32 %v1286, %v1403
  %v1405 = vpop.f32.mrb[0].mxu0
  %1406 = vmatprep.mubr.f32.mxu0 0.0
  %1407 = vmatmul.mubr.f32.gmra.mrb[0].mxu0 %v1307
  %v1408 = vpop.f32.mrb[0].mxu0
  %v1409 = vadd.f32 %v1286, %v1408
  %v1410 = vpop.f32.mrb[0].mxu0
  %1411 = vmatprep.mubr.f32.mxu0 0.0
  %1412 = vmatmul.mubr.f32.gmra.mrb[0].mxu0 %v1310
  %v1413 = vpop.f32.mrb[0].mxu0
  %v1414 = vadd.f32 %v1286, %v1413
  %v1415 = vpop.f32.mrb[0].mxu0
  %1416 = vdwg.mxu0
  %vm1417 = vcmp.gt.f32.partialorder %v1379, 0.0
  %vm1418 = vcmp.gt.f32.partialorder %v1384, 0.0
  %vm1419 = vcmp.gt.f32.partialorder %v1389, 0.0
  %vm1420 = vcmp.gt.f32.partialorder %v1394, 0.0
  %vm1421 = vcmp.gt.f32.partialorder %v1399, 0.0
  %vm1422 = vcmp.gt.f32.partialorder %v1404, 0.0
  %vm1423 = vcmp.gt.f32.partialorder %v1409, 0.0
  %vm1424 = vcmp.gt.f32.partialorder %v1414, 0.0
  %v1425 = vmin.f32 %v1379, 0.0
  %v1426 = vmin.f32 %v1384, 0.0
  %v1427 = vmin.f32 %v1389, 0.0
  %v1428 = vmin.f32 %v1394, 0.0
  %v1429 = vmin.f32 %v1399, 0.0
  %v1430 = vmin.f32 %v1404, 0.0
  %v1431 = vmin.f32 %v1409, 0.0
  %v1432 = vmin.f32 %v1414, 0.0
  %v1433 = vmul.f32 %v1425, 1.442695
  %v1434 = vpow.pop %v1433
  %v1435 = vmul.f32 %v1426, 1.442695
  %v1436 = vpow.pop %v1435
  %v1437 = vmul.f32 %v1427, 1.442695
  %v1438 = vpow.pop %v1437
  %v1439 = vmul.f32 %v1428, 1.442695
  %v1440 = vpow.pop %v1439
  %v1441 = vmul.f32 %v1429, 1.442695
  %v1442 = vpow.pop %v1441
  %v1443 = vmul.f32 %v1430, 1.442695
  %v1444 = vpow.pop %v1443
  %v1445 = vmul.f32 %v1431, 1.442695
  %v1446 = vpow.pop %v1445
  %v1447 = vmul.f32 %v1432, 1.442695
  %v1448 = vpow.pop %v1447
  %v1449 = vsub.f32 %v1434, 1.0
  %v1450 = vsub.f32 %v1436, 1.0
  %v1451 = vsub.f32 %v1438, 1.0
  %v1452 = vsub.f32 %v1440, 1.0
  %v1453 = vsub.f32 %v1442, 1.0
  %v1454 = vsub.f32 %v1444, 1.0
  %v1455 = vsub.f32 %v1446, 1.0
  %v1456 = vsub.f32 %v1448, 1.0
  %v1457 = vsel %vm1417, %v1379, %v1449
  %v1458 = vsel %vm1418, %v1384, %v1450
  %v1459 = vsel %vm1419, %v1389, %v1451
  %v1460 = vsel %vm1420, %v1394, %v1452
  %v1461 = vsel %vm1421, %v1399, %v1453
  %v1462 = vsel %vm1422, %v1404, %v1454
  %v1463 = vsel %vm1423, %v1409, %v1455
  %v1464 = vsel %vm1424, %v1414, %v1456
  %v1465 = vld [vmem:[%s6] sm:$0xff]
  %v1466 = vld [vmem:[%s6 + $0x8] sm:$0xff]
  %v1467 = vld [vmem:[%s6 + $0x10] sm:$0xff]
  %v1468 = vld [vmem:[%s6 + $0x18] sm:$0xff]
  %v1469 = vld [vmem:[%s7] sm:$0x1]
  %v1471 = vlaneseq
  %v1472 = vshrl.u32 %v1471, 7
  %v1473 = vsub.s32 0, %v1472
  %v1474 = vrot.slane %v1469, %v1473
  %v1477 = vsel %vm216, %v746, 0
  %v1480 = vsel %vm216, %v747, 0
  %v1483 = vsel %vm216, %v748, 0
  %v1486 = vsel %vm216, %v749, 0
  %v1489 = vsel %vm216, %v750, 0
  %v1492 = vsel %vm216, %v751, 0
  %v1495 = vsel %vm216, %v752, 0
  %v1498 = vsel %vm216, %v753, 0
  %v1501 = vsel %vm216, %v1457, 0
  %v1504 = vsel %vm216, %v1458, 0
  %v1507 = vsel %vm216, %v1459, 0
  %v1510 = vsel %vm216, %v1460, 0
  %v1513 = vsel %vm216, %v1461, 0
  %v1516 = vsel %vm216, %v1462, 0
  %v1519 = vsel %vm216, %v1463, 0
  %v1522 = vsel %vm216, %v1464, 0
  %1524 = vmatprep.subr.mxu0 0.0
  %1525 = vmatpush1.msra.mxu0 %v1465
  %1526 = vmatprep.subr.mxu0 0.0
  %1527 = vmatpush1.msra.mxu0 %v1466
  %1528 = vmatprep.subr.mxu0 0.0
  %1529 = vmatpush1.msra.mxu0 %v1467
  %1530 = vmatprep.subr.mxu0 0.0
  %1531 = vmatpush1.msra.mxu0 %v1468
  %1532 = vmatprep.subr.mxu0 0.0
  %1533 = vmatpush1.msra.mxu0 0.0
  %1534 = vmatprep.subr.mxu0 0.0
  %1535 = vmatpush1.msra.mxu0 0.0
  %1536 = vmatprep.subr.mxu0 0.0
  %1537 = vmatpush1.msra.mxu0 0.0
  %1538 = vmatprep.subr.mxu0 0.0
  %1539 = vmatpush1.msra.mxu0 0.0
  %1540 = vmatprep.subr.mxu0 0.0
  %1541 = vmatpush1.msra.mxu0 0.0
  %1542 = vmatprep.subr.mxu0 0.0
  %1543 = vmatpush1.msra.mxu0 0.0
  %1544 = vmatprep.subr.mxu0 0.0
  %1545 = vmatpush1.msra.mxu0 0.0
  %1546 = vmatprep.subr.mxu0 0.0
  %1547 = vmatpush1.msra.mxu0 0.0
  %1548 = vmatprep.subr.mxu0 0.0
  %1549 = vmatpush1.msra.mxu0 0.0
  %1550 = vmatprep.subr.mxu0 0.0
  %1551 = vmatpush1.msra.mxu0 0.0
  %1552 = vmatprep.subr.mxu0 0.0
  %1553 = vmatpush1.msra.mxu0 0.0
  %1554 = vmatprep.subr.mxu0 0.0
  %1555 = vmatpush1.msra.mxu0 0.0
  %1556 = vmatprep.subr.mxu0 0.0
  %1557 = vmatpush1.msra.mxu0 0.0
  %1558 = vmatprep.subr.mxu0 0.0
  %1559 = vmatpush1.msra.mxu0 0.0
  %1560 = vmatprep.subr.mxu0 0.0
  %1561 = vmatpush1.msra.mxu0 0.0
  %1562 = vmatprep.subr.mxu0 0.0
  %1563 = vmatpush1.msra.mxu0 0.0
  %1564 = vmatprep.subr.mxu0 0.0
  %1565 = vmatpush1.msra.mxu0 0.0
  %1566 = vmatprep.subr.mxu0 0.0
  %1567 = vmatpush1.msra.mxu0 0.0
  %1568 = vmatprep.subr.mxu0 0.0
  %1569 = vmatpush1.msra.mxu0 0.0
  %1570 = vmatprep.subr.mxu0 0.0
  %1571 = vmatpush1.msra.mxu0 0.0
  %1572 = vmatprep.subr.mxu0 0.0
  %1573 = vmatpush1.msra.mxu0 0.0
  %1574 = vmatprep.subr.mxu0 0.0
  %1575 = vmatpush1.msra.mxu0 0.0
  %1576 = vmatprep.subr.mxu0 0.0
  %1577 = vmatpush1.msra.mxu0 0.0
  %1578 = vmatprep.subr.mxu0 0.0
  %1579 = vmatpush1.msra.mxu0 0.0
  %1580 = vmatprep.subr.mxu0 0.0
  %1581 = vmatpush1.msra.mxu0 0.0
  %1582 = vmatprep.subr.mxu0 0.0
  %1583 = vmatpush1.msra.mxu0 0.0
  %1584 = vmatprep.subr.mxu0 0.0
  %1585 = vmatpush1.msra.mxu0 0.0
  %1586 = vmatprep.subr.mxu0 0.0
  %1587 = vmatpush1.msra.mxu0 0.0
  %1588 = vmatprep.mubr.f32.mxu0 0.0
  %1589 = vmatmul.mubr.f32.gmra.mrb[0].mxu0 %v1477
  %v1590 = vpop.f32.mrb[0].mxu0
  %v1591 = vadd.f32 %v1474, %v1590
  %v1592 = vpop.f32.mrb[0].mxu0
  %1593 = vmatprep.mubr.f32.mxu0 0.0
  %1594 = vmatmul.mubr.f32.gmra.mrb[0].mxu0 %v1480
  %v1595 = vpop.f32.mrb[0].mxu0
  %v1596 = vadd.f32 %v1474, %v1595
  %v1597 = vpop.f32.mrb[0].mxu0
  %1598 = vmatprep.mubr.f32.mxu0 0.0
  %1599 = vmatmul.mubr.f32.gmra.mrb[0].mxu0 %v1483
  %v1600 = vpop.f32.mrb[0].mxu0
  %v1601 = vadd.f32 %v1474, %v1600
  %v1602 = vpop.f32.mrb[0].mxu0
  %1603 = vmatprep.mubr.f32.mxu0 0.0
  %1604 = vmatmul.mubr.f32.gmra.mrb[0].mxu0 %v1486
  %v1605 = vpop.f32.mrb[0].mxu0
  %v1606 = vadd.f32 %v1474, %v1605
  %v1607 = vpop.f32.mrb[0].mxu0
  %1608 = vmatprep.mubr.f32.mxu0 0.0
  %1609 = vmatmul.mubr.f32.gmra.mrb[0].mxu0 %v1489
  %v1610 = vpop.f32.mrb[0].mxu0
  %v1611 = vadd.f32 %v1474, %v1610
  %v1612 = vpop.f32.mrb[0].mxu0
  %1613 = vmatprep.mubr.f32.mxu0 0.0
  %1614 = vmatmul.mubr.f32.gmra.mrb[0].mxu0 %v1492
  %v1615 = vpop.f32.mrb[0].mxu0
  %v1616 = vadd.f32 %v1474, %v1615
  %v1617 = vpop.f32.mrb[0].mxu0
  %1618 = vmatprep.mubr.f32.mxu0 0.0
  %1619 = vmatmul.mubr.f32.gmra.mrb[0].mxu0 %v1495
  %v1620 = vpop.f32.mrb[0].mxu0
  %v1621 = vadd.f32 %v1474, %v1620
  %v1622 = vpop.f32.mrb[0].mxu0
  %1623 = vmatprep.mubr.f32.mxu0 0.0
  %1624 = vmatmul.mubr.f32.gmra.mrb[0].mxu0 %v1498
  %v1625 = vpop.f32.mrb[0].mxu0
  %v1626 = vadd.f32 %v1474, %v1625
  %v1627 = vpop.f32.mrb[0].mxu0
  %1628 = vmatprep.mubr.f32.mxu0 0.0
  %1629 = vmatmul.mubr.f32.gmra.mrb[0].mxu0 %v1501
  %v1630 = vpop.f32.mrb[0].mxu0
  %v1631 = vadd.f32 %v1474, %v1630
  %v1632 = vpop.f32.mrb[0].mxu0
  %1633 = vmatprep.mubr.f32.mxu0 0.0
  %1634 = vmatmul.mubr.f32.gmra.mrb[0].mxu0 %v1504
  %v1635 = vpop.f32.mrb[0].mxu0
  %v1636 = vadd.f32 %v1474, %v1635
  %v1637 = vpop.f32.mrb[0].mxu0
  %1638 = vmatprep.mubr.f32.mxu0 0.0
  %1639 = vmatmul.mubr.f32.gmra.mrb[0].mxu0 %v1507
  %v1640 = vpop.f32.mrb[0].mxu0
  %v1641 = vadd.f32 %v1474, %v1640
  %v1642 = vpop.f32.mrb[0].mxu0
  %1643 = vmatprep.mubr.f32.mxu0 0.0
  %1644 = vmatmul.mubr.f32.gmra.mrb[0].mxu0 %v1510
  %v1645 = vpop.f32.mrb[0].mxu0
  %v1646 = vadd.f32 %v1474, %v1645
  %v1647 = vpop.f32.mrb[0].mxu0
  %1648 = vmatprep.mubr.f32.mxu0 0.0
  %1649 = vmatmul.mubr.f32.gmra.mrb[0].mxu0 %v1513
  %v1650 = vpop.f32.mrb[0].mxu0
  %v1651 = vadd.f32 %v1474, %v1650
  %v1652 = vpop.f32.mrb[0].mxu0
  %1653 = vmatprep.mubr.f32.mxu0 0.0
  %1654 = vmatmul.mubr.f32.gmra.mrb[0].mxu0 %v1516
  %v1655 = vpop.f32.mrb[0].mxu0
  %v1656 = vadd.f32 %v1474, %v1655
  %v1657 = vpop.f32.mrb[0].mxu0
  %1658 = vmatprep.mubr.f32.mxu0 0.0
  %1659 = vmatmul.mubr.f32.gmra.mrb[0].mxu0 %v1519
  %v1660 = vpop.f32.mrb[0].mxu0
  %v1661 = vadd.f32 %v1474, %v1660
  %v1662 = vpop.f32.mrb[0].mxu0
  %1663 = vmatprep.mubr.f32.mxu0 0.0
  %1664 = vmatmul.mubr.f32.gmra.mrb[0].mxu0 %v1522
  %v1665 = vpop.f32.mrb[0].mxu0
  %v1666 = vadd.f32 %v1474, %v1665
  %v1667 = vpop.f32.mrb[0].mxu0
  %1668 = vdwg.mxu0
  %v1669 = vtanh.pop %v1591
  %v1670 = vtanh.pop %v1596
  %v1671 = vtanh.pop %v1601
  %v1672 = vtanh.pop %v1606
  %v1673 = vtanh.pop %v1611
  %v1674 = vtanh.pop %v1616
  %v1675 = vtanh.pop %v1621
  %v1676 = vtanh.pop %v1626
  %v1677 = vtanh.pop %v1631
  %v1678 = vtanh.pop %v1636
  %v1679 = vtanh.pop %v1641
  %v1680 = vtanh.pop %v1646
  %v1681 = vtanh.pop %v1651
  %v1682 = vtanh.pop %v1656
  %v1683 = vtanh.pop %v1661
  %v1684 = vtanh.pop %v1666
  %v1685 = vld [vmem:[%s8] sm:$0x1]
  %v1686 = vadd.f32 %v1669, %v1670
  %v1687 = vadd.f32 %v1686, %v1671
  %v1688 = vadd.f32 %v1687, %v1672
  %v1689 = vadd.f32 %v1688, %v1673
  %v1690 = vadd.f32 %v1689, %v1674
  %v1691 = vadd.f32 %v1690, %v1675
  %v1692 = vadd.f32 %v1691, %v1676
  %v1693 = vrot.slane %v1692, 4
  %v1694 = vadd.f32 %v1692, %v1693
  %v1695 = vrot.slane %v1694, 2
  %v1696 = vadd.f32 %v1694, %v1695
  %v1697 = vrot.slane %v1696, 1
  %v1698 = vadd.f32 %v1696, %v1697
  %v1699 = vmul.f32 %v1698, 0.015625
  %v1700 = vmul.f32 %v1699, %v1685
  %vm1701 = vcmask 1040384
  %v1702 = vsel %vm1701, %v1700, 0.0
  %1703 = vadd.xlane.f32.xlu0 %v1702
  %v1704 = vpop.xlane.xlu0 %1703
  %v1705 = vadd.f32 %v1677, %v1678
  %v1706 = vadd.f32 %v1705, %v1679
  %v1707 = vadd.f32 %v1706, %v1680
  %v1708 = vadd.f32 %v1707, %v1681
  %v1709 = vadd.f32 %v1708, %v1682
  %v1710 = vadd.f32 %v1709, %v1683
  %v1711 = vadd.f32 %v1710, %v1684
  %v1712 = vrot.slane %v1711, 4
  %v1713 = vadd.f32 %v1711, %v1712
  %v1714 = vrot.slane %v1713, 2
  %v1715 = vadd.f32 %v1713, %v1714
  %v1716 = vrot.slane %v1715, 1
  %v1717 = vadd.f32 %v1715, %v1716
  %v1718 = vmul.f32 %v1717, 0.015625
  %v1719 = vmul.f32 %v1718, %v1685
  %v1720 = vsel %vm1701, %v1719, 0.0
  %1721 = vadd.xlane.f32.xlu0 %v1720
  %v1722 = vpop.xlane.xlu0 %1721
  %v1723 = vmax.f32 %v1704, %v1722
  %v1724 = vsub.f32 %v1704, %v1723
  %v1725 = vmul.f32 %v1724, 1.442695
  %v1726 = vpow.pop %v1725
  %v1727 = vsub.f32 %v1722, %v1723
  %v1728 = vmul.f32 %v1727, 1.442695
  %v1729 = vpow.pop %v1728
  %v1730 = vadd.f32 %v1726, %v1729
  %v1731 = vrcp.pop %v1730
  %v1732 = vmul.f32 %v1726, %v1731
  %v1733 = vlaneseq
  %v1734 = vshrl.u32 %v1733, 7
  %v1735 = vsub.s32 0, %v1734
  %v1736 = vrot.slane %v1732, %v1735
  %v1737 = vmul.f32 %v1736, %v746
  %v1738 = vmul.f32 %v1736, %v747
  %v1739 = vmul.f32 %v1736, %v748
  %v1740 = vmul.f32 %v1736, %v749
  %v1741 = vmul.f32 %v1736, %v750
  %v1742 = vmul.f32 %v1736, %v751
  %v1743 = vmul.f32 %v1736, %v752
  %v1744 = vmul.f32 %v1736, %v753
  %v1745 = vadd.f32 %v1737, 0.0
  %v1746 = vadd.f32 %v1738, 0.0
  %v1747 = vadd.f32 %v1739, 0.0
  %v1748 = vadd.f32 %v1740, 0.0
  %v1749 = vadd.f32 %v1741, 0.0
  %v1750 = vadd.f32 %v1742, 0.0
  %v1751 = vadd.f32 %v1743, 0.0
  %v1752 = vadd.f32 %v1744, 0.0
  %v1753 = vmul.f32 %v1729, %v1731
  %v1754 = vlaneseq
  %v1755 = vshrl.u32 %v1754, 7
  %v1756 = vsub.s32 0, %v1755
  %v1757 = vrot.slane %v1753, %v1756
  %v1758 = vmul.f32 %v1757, %v1457
  %v1759 = vmul.f32 %v1757, %v1458
  %v1760 = vmul.f32 %v1757, %v1459
  %v1761 = vmul.f32 %v1757, %v1460
  %v1762 = vmul.f32 %v1757, %v1461
  %v1763 = vmul.f32 %v1757, %v1462
  %v1764 = vmul.f32 %v1757, %v1463
  %v1765 = vmul.f32 %v1757, %v1464
  %v1766 = vadd.f32 %v1745, %v1758
  %v1767 = vadd.f32 %v1746, %v1759
  %v1768 = vadd.f32 %v1747, %v1760
  %v1769 = vadd.f32 %v1748, %v1761
  %v1770 = vadd.f32 %v1749, %v1762
  %v1771 = vadd.f32 %v1750, %v1763
  %v1772 = vadd.f32 %v1751, %v1764
  %v1773 = vadd.f32 %v1752, %v1765
  %v1774 = vld [vmem:[%s9] sm:$0xff]
  %v1775 = vld [vmem:[%s9 + $0x8] sm:$0xff]
  %v1776 = vld [vmem:[%s9 + $0x10] sm:$0xff]
  %v1777 = vld [vmem:[%s9 + $0x18] sm:$0xff]
  %v1778 = vld [vmem:[%s10] sm:$0x1]
  %v1780 = vlaneseq
  %v1781 = vshrl.u32 %v1780, 7
  %v1782 = vsub.s32 0, %v1781
  %v1783 = vrot.slane %v1778, %v1782
  %v1786 = vsel %vm216, %v1766, 0
  %v1789 = vsel %vm216, %v1767, 0
  %v1792 = vsel %vm216, %v1768, 0
  %v1795 = vsel %vm216, %v1769, 0
  %v1798 = vsel %vm216, %v1770, 0
  %v1801 = vsel %vm216, %v1771, 0
  %v1804 = vsel %vm216, %v1772, 0
  %v1807 = vsel %vm216, %v1773, 0
  %1809 = vmatprep.subr.mxu0 0.0
  %1810 = vmatpush1.msra.mxu0 %v1774
  %1811 = vmatprep.subr.mxu0 0.0
  %1812 = vmatpush1.msra.mxu0 %v1775
  %1813 = vmatprep.subr.mxu0 0.0
  %1814 = vmatpush1.msra.mxu0 %v1776
  %1815 = vmatprep.subr.mxu0 0.0
  %1816 = vmatpush1.msra.mxu0 %v1777
  %1817 = vmatprep.subr.mxu0 0.0
  %1818 = vmatpush1.msra.mxu0 0.0
  %1819 = vmatprep.subr.mxu0 0.0
  %1820 = vmatpush1.msra.mxu0 0.0
  %1821 = vmatprep.subr.mxu0 0.0
  %1822 = vmatpush1.msra.mxu0 0.0
  %1823 = vmatprep.subr.mxu0 0.0
  %1824 = vmatpush1.msra.mxu0 0.0
  %1825 = vmatprep.subr.mxu0 0.0
  %1826 = vmatpush1.msra.mxu0 0.0
  %1827 = vmatprep.subr.mxu0 0.0
  %1828 = vmatpush1.msra.mxu0 0.0
  %1829 = vmatprep.subr.mxu0 0.0
  %1830 = vmatpush1.msra.mxu0 0.0
  %1831 = vmatprep.subr.mxu0 0.0
  %1832 = vmatpush1.msra.mxu0 0.0
  %1833 = vmatprep.subr.mxu0 0.0
  %1834 = vmatpush1.msra.mxu0 0.0
  %1835 = vmatprep.subr.mxu0 0.0
  %1836 = vmatpush1.msra.mxu0 0.0
  %1837 = vmatprep.subr.mxu0 0.0
  %1838 = vmatpush1.msra.mxu0 0.0
  %1839 = vmatprep.subr.mxu0 0.0
  %1840 = vmatpush1.msra.mxu0 0.0
  %1841 = vmatprep.subr.mxu0 0.0
  %1842 = vmatpush1.msra.mxu0 0.0
  %1843 = vmatprep.subr.mxu0 0.0
  %1844 = vmatpush1.msra.mxu0 0.0
  %1845 = vmatprep.subr.mxu0 0.0
  %1846 = vmatpush1.msra.mxu0 0.0
  %1847 = vmatprep.subr.mxu0 0.0
  %1848 = vmatpush1.msra.mxu0 0.0
  %1849 = vmatprep.subr.mxu0 0.0
  %1850 = vmatpush1.msra.mxu0 0.0
  %1851 = vmatprep.subr.mxu0 0.0
  %1852 = vmatpush1.msra.mxu0 0.0
  %1853 = vmatprep.subr.mxu0 0.0
  %1854 = vmatpush1.msra.mxu0 0.0
  %1855 = vmatprep.subr.mxu0 0.0
  %1856 = vmatpush1.msra.mxu0 0.0
  %1857 = vmatprep.subr.mxu0 0.0
  %1858 = vmatpush1.msra.mxu0 0.0
  %1859 = vmatprep.subr.mxu0 0.0
  %1860 = vmatpush1.msra.mxu0 0.0
  %1861 = vmatprep.subr.mxu0 0.0
  %1862 = vmatpush1.msra.mxu0 0.0
  %1863 = vmatprep.subr.mxu0 0.0
  %1864 = vmatpush1.msra.mxu0 0.0
  %1865 = vmatprep.subr.mxu0 0.0
  %1866 = vmatpush1.msra.mxu0 0.0
  %1867 = vmatprep.subr.mxu0 0.0
  %1868 = vmatpush1.msra.mxu0 0.0
  %1869 = vmatprep.subr.mxu0 0.0
  %1870 = vmatpush1.msra.mxu0 0.0
  %1871 = vmatprep.subr.mxu0 0.0
  %1872 = vmatpush1.msra.mxu0 0.0
  %1873 = vmatprep.mubr.f32.mxu0 0.0
  %1874 = vmatmul.mubr.f32.gmra.mrb[0].mxu0 %v1786
  %v1875 = vpop.f32.mrb[0].mxu0
  %v1876 = vadd.f32 %v1783, %v1875
  %v1877 = vpop.f32.mrb[0].mxu0
  %1878 = vmatprep.mubr.f32.mxu0 0.0
  %1879 = vmatmul.mubr.f32.gmra.mrb[0].mxu0 %v1789
  %v1880 = vpop.f32.mrb[0].mxu0
  %v1881 = vadd.f32 %v1783, %v1880
  %v1882 = vpop.f32.mrb[0].mxu0
  %1883 = vmatprep.mubr.f32.mxu0 0.0
  %1884 = vmatmul.mubr.f32.gmra.mrb[0].mxu0 %v1792
  %v1885 = vpop.f32.mrb[0].mxu0
  %v1886 = vadd.f32 %v1783, %v1885
  %v1887 = vpop.f32.mrb[0].mxu0
  %1888 = vmatprep.mubr.f32.mxu0 0.0
  %1889 = vmatmul.mubr.f32.gmra.mrb[0].mxu0 %v1795
  %v1890 = vpop.f32.mrb[0].mxu0
  %v1891 = vadd.f32 %v1783, %v1890
  %v1892 = vpop.f32.mrb[0].mxu0
  %1893 = vmatprep.mubr.f32.mxu0 0.0
  %1894 = vmatmul.mubr.f32.gmra.mrb[0].mxu0 %v1798
  %v1895 = vpop.f32.mrb[0].mxu0
  %v1896 = vadd.f32 %v1783, %v1895
  %v1897 = vpop.f32.mrb[0].mxu0
  %1898 = vmatprep.mubr.f32.mxu0 0.0
  %1899 = vmatmul.mubr.f32.gmra.mrb[0].mxu0 %v1801
  %v1900 = vpop.f32.mrb[0].mxu0
  %v1901 = vadd.f32 %v1783, %v1900
  %v1902 = vpop.f32.mrb[0].mxu0
  %1903 = vmatprep.mubr.f32.mxu0 0.0
  %1904 = vmatmul.mubr.f32.gmra.mrb[0].mxu0 %v1804
  %v1905 = vpop.f32.mrb[0].mxu0
  %v1906 = vadd.f32 %v1783, %v1905
  %v1907 = vpop.f32.mrb[0].mxu0
  %1908 = vmatprep.mubr.f32.mxu0 0.0
  %1909 = vmatmul.mubr.f32.gmra.mrb[0].mxu0 %v1807
  %v1910 = vpop.f32.mrb[0].mxu0
  %v1911 = vadd.f32 %v1783, %v1910
  %v1912 = vpop.f32.mrb[0].mxu0
  %1913 = vdwg.mxu0
  %vm1914 = vcmask 64512
  %1915 = vst.msk [vmem:[%s11] sm:$0xff] %vm1914, %v1876
  %1916 = vst.msk [vmem:[%s11 + $0x8] sm:$0xff] %vm1914, %v1881
  %1917 = vst.msk [vmem:[%s11 + $0x10] sm:$0xff] %vm1914, %v1886
  %1918 = vst.msk [vmem:[%s11 + $0x18] sm:$0xff] %vm1914, %v1891
  %1919 = vst.msk [vmem:[%s11 + $0x20] sm:$0xff] %vm1914, %v1896
  %1920 = vst.msk [vmem:[%s11 + $0x28] sm:$0xff] %vm1914, %v1901
  %1921 = vst.msk [vmem:[%s11 + $0x30] sm:$0xff] %vm1914, %v1906
  %1922 = vst.msk [vmem:[%s11 + $0x38] sm:$0xff] %vm1914, %v1911
  // Predicated region
  $region46: #{hgsage_forward.1} parent=0 // pred_check
    _
  $region47: #{hgsage_forward.1} parent=0 // pred_check_branch
    %1924 = sbr.rel (0) target = $region49
  $region48: #{hgsage_forward.1} parent=0 // pred_region
    _
  $region49: #{hgsage_forward.1} parent=0 // pred_fallthru
    _
  // Predicated region
  $region50: #{hgsage_forward.1} parent=0 // pred_check
    _
  $region51: #{hgsage_forward.1} parent=0 // pred_check_branch
    %1926 = sbr.rel (0) target = $region53
  $region52: #{hgsage_forward.1} parent=0 // pred_region
    _
  $region53: #{hgsage_forward.1} parent=0 // pred_fallthru
    _

</llo_original>
